<compile_context>
chip_gen: v6e
topology: v6e:2x2x1
jax: 0.10.0
libtpu: 0.0.40
codegen_flags: <defaults>
</compile_context>

<pallas_src>
import functools

import jax
import jax.numpy as jnp
import numpy as np
from jax.experimental import pallas as pl
from jax.experimental.pallas import tpu as pltpu

BN_EPS = 1e-5
LANE = 128
LEFT_HALO = 16        # sublane-aligned left halo width of the bf16 depthwise scratch


def _activate(x, kind):
    if kind == "HS":   # torch.nn.Hardswish: x * relu6(x + 3) / 6
        return x * jnp.clip(x + 3.0, 0.0, 6.0) * (1.0 / 6.0)
    if kind == "RE":   # torch.nn.ReLU
        return jnp.maximum(x, 0.0)
    return x


def _round_up(n, m=LANE):
    return ((n + m - 1) // m) * m


def _pad_to(a, axis, target):
    pad = target - a.shape[axis]
    if pad <= 0:
        return a
    cfg = [(0, 0)] * a.ndim
    cfg[axis] = (0, pad)
    return jnp.pad(a, cfg)


def _fold_bn(w, b, bn):
    """Fold inference-mode BatchNorm into the preceding 1x1-conv weight / bias."""
    scale = bn["gamma"] * jax.lax.rsqrt(bn["var"] + BN_EPS)
    shift = bn["beta"] - bn["mean"] * scale
    return w * scale[None, :], b * scale + shift


def _pick_strip_rows(ho, wo, w_in, cp, stride, ksize, budget=6 << 20):
    """Largest divisor of ho whose per-strip expanded-channel working set fits budget."""
    pad = ksize // 2
    for t in range(ho, 0, -1):
        if ho % t:
            continue
        th_in = (t - 1) * stride + ksize
        wh = LEFT_HALO + w_in + pad
        need = (th_in * wh * cp * 2            # bf16 halo scratch
                + t * wo * cp * 4              # f32 depthwise accumulator (live value)
                + 2 * t * wo * cp * 2          # double-buffered h2 output block
                + th_in * w_in * cp * 4)       # f32 up-conv result (live value)
        if need <= budget:
            return t
    return 1


def _pick_m_tile(m):
    for t in (512, 256):
        if m % t == 0:
            return t
    if m >= 512:
        return 512
    if m >= 256:
        return 256
    return m


# ---- Kernel 1: conv1x1_up + BN1 + act -> depthwise KxK -> 1x1 + BN2 + act + SE pool ----
def _fused_up_dw_pw_kernel(x_ref, wup_ref, bup_ref, wdw_ref, bdw_ref, wpw_ref, bpw_ref,
                           h2_ref, pool_ref, hpad_ref,
                           *, ksize, stride, act, th_out, wo, inv_hw, bot_oob):
    pad = ksize // 2
    lh = LEFT_HALO
    th_in, wh, cp = hpad_ref.shape
    w_in, cinp = x_ref.shape[2], x_ref.shape[3]
    s = pl.program_id(1)

    # conv1x1_up + folded BN1 + activation on this strip's halo-extended input rows
    # (bf16 x bf16 on the MXU, f32 accumulate).  x is H-padded in the wrapper so every
    # strip reads a uniform (th_in, W) window.
    row0 = s * (th_out * stride)
    xs = x_ref[0, pl.ds(row0, th_in), :, :]                       # (th_in, W, Cin_p)
    up = jnp.dot(xs.reshape(th_in * w_in, cinp), wup_ref[...],
                 preferred_element_type=jnp.float32) + bup_ref[...]
    up = _activate(up, act)
    # bf16 halo scratch (halves the tap re-read bytes); interior store is 16-aligned.
    hpad_ref[:, lh:lh + w_in, :] = up.reshape(th_in, w_in, cp).astype(hpad_ref.dtype)

    # Zero only the halo borders ('same' zero padding applies to the depthwise INPUT).
    if pad > 0:
        zcol = jnp.zeros((th_in, pad, cp), hpad_ref.dtype)
        hpad_ref[:, lh - pad:lh, :] = zcol
        hpad_ref[:, lh + w_in:lh + w_in + pad, :] = zcol

        @pl.when(s == 0)
        def _():                                                  # rows above the image
            hpad_ref[0:pad, :, :] = jnp.zeros((pad, wh, cp), hpad_ref.dtype)

        if bot_oob > 0:
            @pl.when(s == pl.num_programs(1) - 1)
            def _():                                              # rows below the image
                hpad_ref[th_in - bot_oob:th_in, :, :] = jnp.zeros(
                    (bot_oob, wh, cp), hpad_ref.dtype)

    # Depthwise KxK (VPU FMAs); stride applied inside the tap reads.
    def tap(kh, kw):
        c0 = lh - pad + kw
        if stride == 1:
            return hpad_ref[kh:kh + th_out, c0:c0 + wo, :]
        return hpad_ref[pl.ds(kh, th_out, stride=stride),
                        pl.ds(c0, wo, stride=stride), :]

    acc = tap(0, 0).astype(jnp.float32) * wdw_ref[0:1, :] + bdw_ref[...]
    for kh in range(ksize):
        for kw in range(ksize):
            if kh == 0 and kw == 0:
                continue
            idx = kh * ksize + kw
            acc = acc + tap(kh, kw).astype(jnp.float32) * wdw_ref[idx:idx + 1, :]

    # 1x1 pointwise of convDW + folded BN2 + activation (MXU).
    h2 = jnp.dot(acc.reshape(th_out * wo, cp).astype(jnp.bfloat16), wpw_ref[...],
                 preferred_element_type=jnp.float32) + bpw_ref[...]
    h2 = _activate(h2, act)

    # Partial SE global-average-pool for this strip (summed over strips in the wrapper),
    # so the SE layer never re-reads the large activation from HBM.
    pool_ref[0, 0] = jnp.sum(h2, axis=0, keepdims=True) * inv_hw
    h2_ref[0] = h2.reshape(th_out, wo, cp).astype(h2_ref.dtype)


def fused_up_dw_pw(x, w_up, b_up, w_dw, b_dw, w_pw, b_pw, *,
                   ksize, stride, act, ho, wo, th_out):
    bsz, hp, w_in, cinp = x.shape                 # x already H-padded + channel-padded
    cp = w_up.shape[1]
    pad = ksize // 2
    th_in = (th_out - 1) * stride + ksize
    wh = LEFT_HALO + w_in + pad
    n_strips = ho // th_out
    h_img = hp - 2 * pad
    bot_oob = max(0, (ho - 1) * stride + ksize - pad - h_img)

    kern = functools.partial(_fused_up_dw_pw_kernel, ksize=ksize, stride=stride,
                             act=act, th_out=th_out, wo=wo,
                             inv_hw=1.0 / float(ho * wo), bot_oob=bot_oob)

    # Scoped-VMEM request from the actual buffer sum (v5e's default is only 16 MiB),
    # capped below v7x's 64 MiB physical VMEM.
    est = (2 * hp * w_in * cinp * 2                       # input block, double-buffered
           + 2 * (cinp * cp + cp * cp) * 2                # bf16 weights, double-buffered
           + 2 * (ksize * ksize + 4) * cp * 4             # f32 taps + biases
           + th_in * wh * cp * 2                          # bf16 halo scratch
           + 2 * (th_out * wo * cp * 2 + cp * 4)          # output blocks, double-buffered
           + th_in * w_in * cp * 4 + 2 * th_out * wo * cp * 4)   # live f32 values
    vmem_limit = int(min(56 << 20, max(32 << 20, 2 * est)))

    return pl.pallas_call(
        kern,
        out_shape=(jax.ShapeDtypeStruct((bsz, ho, wo, cp), jnp.bfloat16),
                   jax.ShapeDtypeStruct((bsz, n_strips, 1, cp), jnp.float32)),
        grid=(bsz, n_strips),
        in_specs=[
            pl.BlockSpec((1, hp, w_in, cinp), lambda b, s: (b, 0, 0, 0)),
            pl.BlockSpec((cinp, cp), lambda b, s: (0, 0)),
            pl.BlockSpec((1, cp), lambda b, s: (0, 0)),
            pl.BlockSpec((ksize * ksize, cp), lambda b, s: (0, 0)),
            pl.BlockSpec((1, cp), lambda b, s: (0, 0)),
            pl.BlockSpec((cp, cp), lambda b, s: (0, 0)),
            pl.BlockSpec((1, cp), lambda b, s: (0, 0)),
        ],
        out_specs=(pl.BlockSpec((1, th_out, wo, cp), lambda b, s: (b, s, 0, 0)),
                   pl.BlockSpec((1, 1, 1, cp), lambda b, s: (b, s, 0, 0))),
        scratch_shapes=[pltpu.VMEM((th_in, wh, cp), jnp.bfloat16)],
        compiler_params=pltpu.CompilerParams(
            dimension_semantics=("parallel", "parallel"),
            vmem_limit_bytes=vmem_limit),
    )(x, w_up, b_up, w_dw, b_dw, w_pw, b_pw)


# ---- Kernel 2: SE gating fused into conv1x1_down + BN3, NCHW-layout output ------------
def _se_down_bn_kernel(h2_ref, gate_ref, wd_ref, bd_ref, o_ref, *, need_se, out_ch):
    xb = h2_ref[0]                                                # (tm, Cp) bf16
    if need_se:
        xb = (xb.astype(jnp.float32) * gate_ref[0]).astype(jnp.bfloat16)
    # (Cout_p, tm): spatial on lanes, channels on sublanes, so only the out_ch real
    # channels are written back (no padded writeback, no wrapper transpose/slice).
    res = jax.lax.dot_general(wd_ref[...], xb, (((1,), (1,)), ((), ())),
                              preferred_element_type=jnp.float32)
    res = res + bd_ref[...]
    o_ref[0] = res[:out_ch, :]


def se_down_bn(h2_flat, gate, w_down_t, b_down, *, need_se, out_ch):
    bsz, m, cp = h2_flat.shape
    coutp = w_down_t.shape[0]
    tm = _pick_m_tile(m)
    kern = functools.partial(_se_down_bn_kernel, need_se=need_se, out_ch=out_ch)
    return pl.pallas_call(
        kern,
        out_shape=jax.ShapeDtypeStruct((bsz, out_ch, m), jnp.float32),
        grid=(bsz, pl.cdiv(m, tm)),
        in_specs=[
            pl.BlockSpec((1, tm, cp), lambda b, j: (b, j, 0)),
            pl.BlockSpec((1, 1, cp), lambda b, j: (b, 0, 0)),
            pl.BlockSpec((coutp, cp), lambda b, j: (0, 0)),
            pl.BlockSpec((coutp, 1), lambda b, j: (0, 0)),
        ],
        out_specs=pl.BlockSpec((1, out_ch, tm), lambda b, j: (b, 0, j)),
        compiler_params=pltpu.CompilerParams(
            dimension_semantics=("parallel", "parallel")),
    )(h2_flat, gate, w_down_t, b_down)


# ------------------------------ parameter setup -----------------------------------------
def init_params(key, in_ch, out_ch, exp, ksize, reduce):
    ks = jax.random.split(key, 16)

    def nrm(k, shape, s=0.1):
        return s * jax.random.normal(k, shape, jnp.float32)

    def bn_params(k, c):
        k1, k2, k3, k4 = jax.random.split(k, 4)
        return {
            "gamma": 1.0 + 0.1 * jax.random.normal(k1, (c,), jnp.float32),
            "beta": 0.1 * jax.random.normal(k2, (c,), jnp.float32),
            "mean": 0.1 * jax.random.normal(k3, (c,), jnp.float32),
            "var": 1.0 + 0.1 * jax.random.uniform(k4, (c,), jnp.float32),
        }

    hid = exp // reduce
    return {
        "w_up": nrm(ks[0], (in_ch, exp)),
        "b_up": nrm(ks[1], (exp,)),
        "bn1": bn_params(ks[2], exp),
        "w_dw": nrm(ks[3], (ksize, ksize, exp)),
        "b_dw": nrm(ks[4], (exp,)),
        "w_pw": nrm(ks[5], (exp, exp)),
        "b_pw": nrm(ks[6], (exp,)),
        "bn2": bn_params(ks[7], exp),
        "w_se1": nrm(ks[8], (exp, hid)),
        "b_se1": nrm(ks[9], (hid,)),
        "w_se2": nrm(ks[10], (hid, exp)),
        "b_se2": nrm(ks[11], (exp,)),
        "w_down": nrm(ks[12], (exp, out_ch)),
        "b_down": nrm(ks[13], (out_ch,)),
        "bn3": bn_params(ks[14], out_ch),
    }


# --------------------------------- forward -----------------------------------------------
def non_residual_bottleneck_forward(x_nchw, params, *, ksize, stride, nl, need_se,
                                    strip_rows=None):
    bsz, cin, h, w = x_nchw.shape
    exp = params["w_up"].shape[1]
    out_ch = params["w_down"].shape[1]
    cinp, cp, coutp = _round_up(cin), _round_up(exp), _round_up(out_ch)
    pad = ksize // 2
    ho = (h + 2 * pad - ksize) // stride + 1
    wo = (w + 2 * pad - ksize) // stride + 1

    # NCHW -> NHWC, bf16, channel pad to a lane-dense multiple of 128, and H pad by the
    # depthwise halo so every strip reads a uniform (th_in, W) window.
    x = jnp.transpose(x_nchw, (0, 2, 3, 1)).astype(jnp.bfloat16)
    x = jnp.pad(x, ((0, 0), (pad, pad), (0, 0), (0, cinp - cin)))

    # Fold BN into the 1x1 convs; padded channels carry exact zeros end-to-end.
    w_up, b_up = _fold_bn(params["w_up"], params["b_up"], params["bn1"])
    w_up = _pad_to(_pad_to(w_up, 0, cinp), 1, cp).astype(jnp.bfloat16)
    b_up = _pad_to(b_up, 0, cp).reshape(1, cp).astype(jnp.float32)

    w_dw = _pad_to(params["w_dw"].reshape(ksize * ksize, exp), 1, cp).astype(jnp.float32)
    b_dw = _pad_to(params["b_dw"], 0, cp).reshape(1, cp).astype(jnp.float32)

    w_pw, b_pw = _fold_bn(params["w_pw"], params["b_pw"], params["bn2"])
    w_pw = _pad_to(_pad_to(w_pw, 0, cp), 1, cp).astype(jnp.bfloat16)
    b_pw = _pad_to(b_pw, 0, cp).reshape(1, cp).astype(jnp.float32)

    w_down, b_down = _fold_bn(params["w_down"], params["b_down"], params["bn3"])
    w_down_t = jnp.transpose(_pad_to(_pad_to(w_down, 0, cp), 1, coutp)).astype(jnp.bfloat16)
    b_down = _pad_to(b_down, 0, coutp).reshape(coutp, 1).astype(jnp.float32)

    if strip_rows is not None and ho % strip_rows == 0:
        th_out = strip_rows
    else:
        th_out = _pick_strip_rows(ho, wo, w, cp, stride, ksize)

    h2, pool_parts = fused_up_dw_pw(x, w_up, b_up, w_dw, b_dw, w_pw, b_pw,
                                    ksize=ksize, stride=stride, act=nl,
                                    ho=ho, wo=wo, th_out=th_out)

    if need_se:
        # Tiny SE MLP on the pooled vectors stays in plain JAX / f32 (no kernel launch).
        pooled = jnp.sum(pool_parts, axis=(1, 2))[:, :exp]            # (B, exp)
        hid = jnp.maximum(pooled @ params["w_se1"] + params["b_se1"], 0.0)
        a = jax.nn.sigmoid(hid @ params["w_se2"] + params["b_se2"])
        gate = jnp.pad(a, ((0, 0), (0, cp - exp)))[:, None, :]        # (B, 1, Cp) f32
    else:
        gate = jnp.ones((bsz, 1, cp), jnp.float32)   # unused: kernel skips SE statically

    out = se_down_bn(h2.reshape(bsz, ho * wo, cp), gate, w_down_t, b_down,
                     need_se=need_se, out_ch=out_ch)
    return out.reshape(bsz, out_ch, ho, wo)          # already NCHW


# ----------------------------- pure-JAX reference ----------------------------------------
def reference_forward(x_nchw, params, *, ksize, stride, nl, need_se):
    x = jnp.transpose(x_nchw, (0, 2, 3, 1)).astype(jnp.float32)

    def bn(z, prm):
        scale = prm["gamma"] / jnp.sqrt(prm["var"] + BN_EPS)
        return (z - prm["mean"]) * scale + prm["beta"]

    h = jnp.einsum("bhwc,cd->bhwd", x, params["w_up"]) + params["b_up"]
    h = _activate(bn(h, params["bn1"]), nl)
    c = h.shape[-1]
    p_ = ksize // 2
    wdw = params["w_dw"].reshape(ksize, ksize, 1, c)
    dw = jax.lax.conv_general_dilated(
        h, wdw, window_strides=(stride, stride), padding=[(p_, p_), (p_, p_)],
        dimension_numbers=("NHWC", "HWIO", "NHWC"), feature_group_count=c,
    ) + params["b_dw"]
    h2 = jnp.einsum("bhwc,cd->bhwd", dw, params["w_pw"]) + params["b_pw"]
    h2 = _activate(bn(h2, params["bn2"]), nl)
    if need_se:
        pooled = jnp.mean(h2, axis=(1, 2))
        hid = jnp.maximum(pooled @ params["w_se1"] + params["b_se1"], 0.0)
        a = jax.nn.sigmoid(hid @ params["w_se2"] + params["b_se2"])
        h2 = h2 * a[:, None, None, :]
    out = jnp.einsum("bhwc,cd->bhwd", h2, params["w_down"]) + params["b_down"]
    out = bn(out, params["bn3"])
    return jnp.transpose(out, (0, 3, 1, 2))


if __name__ == "__main__":
    key = jax.random.PRNGKey(0)

    configs = [
        # 3x3, Hardswish, SE, 4 row-strips (exercises halos + partial SE pools)
        dict(in_ch=4, out_ch=8, exp=16, ksize=3, stride=1, nl="HS", need_se=True,
             reduce=4, strip_rows=4),
        # 5x5, ReLU, no SE, 2 row-strips (exercises the wider halo + no-SE path)
        dict(in_ch=8, out_ch=16, exp=32, ksize=5, stride=1, nl="RE", need_se=False,
             reduce=4, strip_rows=8),
    ]

    for cfg in configs:
        key, kx, kp = jax.random.split(key, 3)
        x = jax.random.normal(kx, (2, cfg["in_ch"], 16, 16), jnp.float32)  # NCHW
        params = init_params(kp, cfg["in_ch"], cfg["out_ch"], cfg["exp"],
                             cfg["ksize"], cfg["reduce"])

        y = non_residual_bottleneck_forward(
            x, params, ksize=cfg["ksize"], stride=cfg["stride"], nl=cfg["nl"],
            need_se=cfg["need_se"], strip_rows=cfg["strip_rows"])
        y = jax.block_until_ready(y)

        y_ref = reference_forward(x, params, ksize=cfg["ksize"], stride=cfg["stride"],
                                  nl=cfg["nl"], need_se=cfg["need_se"])
        # bf16 MXU path (f32 accumulate): tolerance loosened intentionally.
        np.testing.assert_allclose(np.asarray(y), np.asarray(y_ref),
                                   rtol=2e-2, atol=2e-2)

    print("KERNEL_OK")
</pallas_src>

<mosaic_0001>
module attributes {stable_mosaic.version = 11 : i64} {
  func.func @_fused_up_dw_pw_kernel(%arg0: i32, %arg1: i32, %arg2: memref<1x18x16x128xbf16, #tpu.memory_space<vmem>>, %arg3: memref<128x128xbf16, #tpu.memory_space<vmem>>, %arg4: memref<1x128xf32, #tpu.memory_space<vmem>>, %arg5: memref<9x128xf32, #tpu.memory_space<vmem>>, %arg6: memref<1x128xf32, #tpu.memory_space<vmem>>, %arg7: memref<128x128xbf16, #tpu.memory_space<vmem>>, %arg8: memref<1x128xf32, #tpu.memory_space<vmem>>, %arg9: memref<1x4x16x128xbf16, #tpu.memory_space<vmem>>, %arg10: memref<1x1x1x128xf32, #tpu.memory_space<vmem>>, %arg11: memref<6x33x128xbf16, #tpu.memory_space<vmem>>) attributes {dimension_semantics = [#tpu.dimension_semantics<parallel>, #tpu.dimension_semantics<parallel>], iteration_bounds = array<i64: 2, 4>, scalar_prefetch = 0 : i64, scratch_operands = 1 : i64, tpu.core_type = #tpu.core_type<tc>, window_params = [{transform_indices = @transform_0, window_bounds = array<i64: 1, 18, 16, 128>}, {pipeline_mode = #tpu.pipeline_mode<synchronous>, transform_indices = @transform_1, window_bounds = array<i64: 128, 128>}, {pipeline_mode = #tpu.pipeline_mode<synchronous>, transform_indices = @transform_2, window_bounds = array<i64: 1, 128>}, {pipeline_mode = #tpu.pipeline_mode<synchronous>, transform_indices = @transform_3, window_bounds = array<i64: 9, 128>}, {pipeline_mode = #tpu.pipeline_mode<synchronous>, transform_indices = @transform_4, window_bounds = array<i64: 1, 128>}, {pipeline_mode = #tpu.pipeline_mode<synchronous>, transform_indices = @transform_5, window_bounds = array<i64: 128, 128>}, {pipeline_mode = #tpu.pipeline_mode<synchronous>, transform_indices = @transform_6, window_bounds = array<i64: 1, 128>}, {transform_indices = @transform_7, window_bounds = array<i64: 1, 4, 16, 128>}, {transform_indices = @transform_8, window_bounds = array<i64: 1, 1, 1, 128>}]} {
    %c4_i32 = arith.constant 4 : i32
    %0 = arith.muli %arg1, %c4_i32 : i32
    %c0 = arith.constant 0 : index
    %1 = arith.index_cast %0 : i32 to index
    %c0_0 = arith.constant 0 : index
    %c0_1 = arith.constant 0 : index
    %2 = vector.load %arg2[%c0, %1, %c0_0, %c0_1] : memref<1x18x16x128xbf16, #tpu.memory_space<vmem>>, vector<1x6x16x128xbf16>
    %3 = vector.shape_cast %2 : vector<1x6x16x128xbf16> to vector<6x16x128xbf16>
    %4 = vector.shape_cast %3 : vector<6x16x128xbf16> to vector<96x128xbf16>
    %c0_2 = arith.constant 0 : index
    %c0_3 = arith.constant 0 : index
    %5 = vector.load %arg3[%c0_2, %c0_3] : memref<128x128xbf16, #tpu.memory_space<vmem>>, vector<128x128xbf16>
    %cst = arith.constant dense<0.000000e+00> : vector<96x128xf32>
    %6 = tpu.matmul %4, %5, %cst {dimension_numbers = #tpu.dot_dimension_numbers<[1], [0], [0], [1], [0, 0, 1, 1], [], []>} : vector<96x128xbf16>, vector<128x128xbf16>, vector<96x128xf32> -> vector<96x128xf32>
    %c0_4 = arith.constant 0 : index
    %c0_5 = arith.constant 0 : index
    %7 = vector.load %arg4[%c0_4, %c0_5] : memref<1x128xf32, #tpu.memory_space<vmem>>, vector<1x128xf32>
    %8 = vector.broadcast %7 : vector<1x128xf32> to vector<96x128xf32>
    %9 = arith.addf %6, %8 : vector<96x128xf32>
    %cst_6 = arith.constant 3.000000e+00 : f32
    %10 = vector.broadcast %cst_6 : f32 to vector<96x128xf32>
    %11 = arith.addf %9, %10 : vector<96x128xf32>
    %cst_7 = arith.constant 0.000000e+00 : f32
    %cst_8 = arith.constant 6.000000e+00 : f32
    %12 = vector.broadcast %cst_7 : f32 to vector<96x128xf32>
    %13 = arith.maximumf %12, %11 : vector<96x128xf32>
    %14 = vector.broadcast %cst_8 : f32 to vector<96x128xf32>
    %15 = arith.minimumf %14, %13 : vector<96x128xf32>
    %16 = arith.mulf %9, %15 : vector<96x128xf32>
    %cst_9 = arith.constant 0.166666672 : f32
    %17 = vector.broadcast %cst_9 : f32 to vector<96x128xf32>
    %18 = arith.mulf %16, %17 : vector<96x128xf32>
    %19 = vector.shape_cast %18 : vector<96x128xf32> to vector<6x16x128xf32>
    %20 = arith.truncf %19 : vector<6x16x128xf32> to vector<6x16x128xbf16>
    %c0_10 = arith.constant 0 : index
    %c16 = arith.constant 16 : index
    %c0_11 = arith.constant 0 : index
    %21 = vector.load %arg11[%c0_10, %c16, %c0_11] : memref<6x33x128xbf16, #tpu.memory_space<vmem>>, vector<6x16x128xbf16>
    tpu.vector_store %arg11[%c0_10, %c16, %c0_11], %20 {strides = array<i32>} : memref<6x33x128xbf16, #tpu.memory_space<vmem>>, vector<6x16x128xbf16>,
    %cst_12 = arith.constant 0.000000e+00 : bf16
    %22 = vector.broadcast %cst_12 : bf16 to vector<6x1x128xbf16>
    %c0_13 = arith.constant 0 : index
    %c15 = arith.constant 15 : index
    %c0_14 = arith.constant 0 : index
    %23 = vector.load %arg11[%c0_13, %c15, %c0_14] : memref<6x33x128xbf16, #tpu.memory_space<vmem>>, vector<6x1x128xbf16>
    tpu.vector_store %arg11[%c0_13, %c15, %c0_14], %22 {strides = array<i32>} : memref<6x33x128xbf16, #tpu.memory_space<vmem>>, vector<6x1x128xbf16>,
    %c0_15 = arith.constant 0 : index
    %c32 = arith.constant 32 : index
    %c0_16 = arith.constant 0 : index
    %24 = vector.load %arg11[%c0_15, %c32, %c0_16] : memref<6x33x128xbf16, #tpu.memory_space<vmem>>, vector<6x1x128xbf16>
    tpu.vector_store %arg11[%c0_15, %c32, %c0_16], %22 {strides = array<i32>} : memref<6x33x128xbf16, #tpu.memory_space<vmem>>, vector<6x1x128xbf16>,
    %c0_i32 = arith.constant 0 : i32
    %25 = arith.cmpi eq, %arg1, %c0_i32 : i32
    %26 = arith.extui %25 : i1 to i32
    %c0_i32_17 = arith.constant 0 : i32
    %27 = arith.cmpi ne, %26, %c0_i32_17 : i32
    scf.if %27 {
      %cst_76 = arith.constant 0.000000e+00 : bf16
      %125 = vector.broadcast %cst_76 : bf16 to vector<1x33x128xbf16>
      %c0_77 = arith.constant 0 : index
      %c0_78 = arith.constant 0 : index
      %c0_79 = arith.constant 0 : index
      %126 = vector.load %arg11[%c0_77, %c0_78, %c0_79] : memref<6x33x128xbf16, #tpu.memory_space<vmem>>, vector<1x33x128xbf16>
      tpu.vector_store %arg11[%c0_77, %c0_78, %c0_79], %125 {strides = array<i32>} : memref<6x33x128xbf16, #tpu.memory_space<vmem>>, vector<1x33x128xbf16>,
    } else {
    }
    %c3_i32 = arith.constant 3 : i32
    %28 = arith.cmpi eq, %arg1, %c3_i32 : i32
    %29 = arith.extui %28 : i1 to i32
    %c0_i32_18 = arith.constant 0 : i32
    %30 = arith.cmpi ne, %29, %c0_i32_18 : i32
    scf.if %30 {
      %cst_76 = arith.constant 0.000000e+00 : bf16
      %125 = vector.broadcast %cst_76 : bf16 to vector<1x33x128xbf16>
      %c5_77 = arith.constant 5 : index
      %c0_78 = arith.constant 0 : index
      %c0_79 = arith.constant 0 : index
      %126 = vector.load %arg11[%c5_77, %c0_78, %c0_79] : memref<6x33x128xbf16, #tpu.memory_space<vmem>>, vector<1x33x128xbf16>
      tpu.vector_store %arg11[%c5_77, %c0_78, %c0_79], %125 {strides = array<i32>} : memref<6x33x128xbf16, #tpu.memory_space<vmem>>, vector<1x33x128xbf16>,
    } else {
    }
    %c0_19 = arith.constant 0 : index
    %c15_20 = arith.constant 15 : index
    %c0_21 = arith.constant 0 : index
    %31 = vector.load %arg11[%c0_19, %c15_20, %c0_21] : memref<6x33x128xbf16, #tpu.memory_space<vmem>>, vector<4x16x128xbf16>
    %32 = arith.extf %31 : vector<4x16x128xbf16> to vector<4x16x128xf32>
    %c0_22 = arith.constant 0 : index
    %c0_23 = arith.constant 0 : index
    %33 = vector.load %arg5[%c0_22, %c0_23] : memref<9x128xf32, #tpu.memory_space<vmem>>, vector<1x128xf32>
    %34 = vector.shape_cast %33 : vector<1x128xf32> to vector<1x1x128xf32>
    %35 = vector.broadcast %34 : vector<1x1x128xf32> to vector<4x16x128xf32>
    %36 = arith.mulf %32, %35 : vector<4x16x128xf32>
    %c0_24 = arith.constant 0 : index
    %c0_25 = arith.constant 0 : index
    %37 = vector.load %arg6[%c0_24, %c0_25] : memref<1x128xf32, #tpu.memory_space<vmem>>, vector<1x128xf32>
    %38 = vector.shape_cast %37 : vector<1x128xf32> to vector<1x1x128xf32>
    %39 = vector.broadcast %38 : vector<1x1x128xf32> to vector<4x16x128xf32>
    %40 = arith.addf %36, %39 : vector<4x16x128xf32>
    %c0_26 = arith.constant 0 : index
    %c16_27 = arith.constant 16 : index
    %c0_28 = arith.constant 0 : index
    %41 = vector.load %arg11[%c0_26, %c16_27, %c0_28] : memref<6x33x128xbf16, #tpu.memory_space<vmem>>, vector<4x16x128xbf16>
    %42 = arith.extf %41 : vector<4x16x128xbf16> to vector<4x16x128xf32>
    %c1 = arith.constant 1 : index
    %c0_29 = arith.constant 0 : index
    %43 = vector.load %arg5[%c1, %c0_29] : memref<9x128xf32, #tpu.memory_space<vmem>>, vector<1x128xf32>
    %44 = vector.shape_cast %43 : vector<1x128xf32> to vector<1x1x128xf32>
    %45 = vector.broadcast %44 : vector<1x1x128xf32> to vector<4x16x128xf32>
    %46 = arith.mulf %42, %45 : vector<4x16x128xf32>
    %47 = arith.addf %40, %46 : vector<4x16x128xf32>
    %c0_30 = arith.constant 0 : index
    %c17 = arith.constant 17 : index
    %c0_31 = arith.constant 0 : index
    %48 = vector.load %arg11[%c0_30, %c17, %c0_31] : memref<6x33x128xbf16, #tpu.memory_space<vmem>>, vector<4x16x128xbf16>
    %49 = arith.extf %48 : vector<4x16x128xbf16> to vector<4x16x128xf32>
    %c2 = arith.constant 2 : index
    %c0_32 = arith.constant 0 : index
    %50 = vector.load %arg5[%c2, %c0_32] : memref<9x128xf32, #tpu.memory_space<vmem>>, vector<1x128xf32>
    %51 = vector.shape_cast %50 : vector<1x128xf32> to vector<1x1x128xf32>
    %52 = vector.broadcast %51 : vector<1x1x128xf32> to vector<4x16x128xf32>
    %53 = arith.mulf %49, %52 : vector<4x16x128xf32>
    %54 = arith.addf %47, %53 : vector<4x16x128xf32>
    %c1_33 = arith.constant 1 : index
    %c15_34 = arith.constant 15 : index
    %c0_35 = arith.constant 0 : index
    %55 = vector.load %arg11[%c1_33, %c15_34, %c0_35] : memref<6x33x128xbf16, #tpu.memory_space<vmem>>, vector<4x16x128xbf16>
    %56 = arith.extf %55 : vector<4x16x128xbf16> to vector<4x16x128xf32>
    %c3 = arith.constant 3 : index
    %c0_36 = arith.constant 0 : index
    %57 = vector.load %arg5[%c3, %c0_36] : memref<9x128xf32, #tpu.memory_space<vmem>>, vector<1x128xf32>
    %58 = vector.shape_cast %57 : vector<1x128xf32> to vector<1x1x128xf32>
    %59 = vector.broadcast %58 : vector<1x1x128xf32> to vector<4x16x128xf32>
    %60 = arith.mulf %56, %59 : vector<4x16x128xf32>
    %61 = arith.addf %54, %60 : vector<4x16x128xf32>
    %c1_37 = arith.constant 1 : index
    %c16_38 = arith.constant 16 : index
    %c0_39 = arith.constant 0 : index
    %62 = vector.load %arg11[%c1_37, %c16_38, %c0_39] : memref<6x33x128xbf16, #tpu.memory_space<vmem>>, vector<4x16x128xbf16>
    %63 = arith.extf %62 : vector<4x16x128xbf16> to vector<4x16x128xf32>
    %c4 = arith.constant 4 : index
    %c0_40 = arith.constant 0 : index
    %64 = vector.load %arg5[%c4, %c0_40] : memref<9x128xf32, #tpu.memory_space<vmem>>, vector<1x128xf32>
    %65 = vector.shape_cast %64 : vector<1x128xf32> to vector<1x1x128xf32>
    %66 = vector.broadcast %65 : vector<1x1x128xf32> to vector<4x16x128xf32>
    %67 = arith.mulf %63, %66 : vector<4x16x128xf32>
    %68 = arith.addf %61, %67 : vector<4x16x128xf32>
    %c1_41 = arith.constant 1 : index
    %c17_42 = arith.constant 17 : index
    %c0_43 = arith.constant 0 : index
    %69 = vector.load %arg11[%c1_41, %c17_42, %c0_43] : memref<6x33x128xbf16, #tpu.memory_space<vmem>>, vector<4x16x128xbf16>
    %70 = arith.extf %69 : vector<4x16x128xbf16> to vector<4x16x128xf32>
    %c5 = arith.constant 5 : index
    %c0_44 = arith.constant 0 : index
    %71 = vector.load %arg5[%c5, %c0_44] : memref<9x128xf32, #tpu.memory_space<vmem>>, vector<1x128xf32>
    %72 = vector.shape_cast %71 : vector<1x128xf32> to vector<1x1x128xf32>
    %73 = vector.broadcast %72 : vector<1x1x128xf32> to vector<4x16x128xf32>
    %74 = arith.mulf %70, %73 : vector<4x16x128xf32>
    %75 = arith.addf %68, %74 : vector<4x16x128xf32>
    %c2_45 = arith.constant 2 : index
    %c15_46 = arith.constant 15 : index
    %c0_47 = arith.constant 0 : index
    %76 = vector.load %arg11[%c2_45, %c15_46, %c0_47] : memref<6x33x128xbf16, #tpu.memory_space<vmem>>, vector<4x16x128xbf16>
    %77 = arith.extf %76 : vector<4x16x128xbf16> to vector<4x16x128xf32>
    %c6 = arith.constant 6 : index
    %c0_48 = arith.constant 0 : index
    %78 = vector.load %arg5[%c6, %c0_48] : memref<9x128xf32, #tpu.memory_space<vmem>>, vector<1x128xf32>
    %79 = vector.shape_cast %78 : vector<1x128xf32> to vector<1x1x128xf32>
    %80 = vector.broadcast %79 : vector<1x1x128xf32> to vector<4x16x128xf32>
    %81 = arith.mulf %77, %80 : vector<4x16x128xf32>
    %82 = arith.addf %75, %81 : vector<4x16x128xf32>
    %c2_49 = arith.constant 2 : index
    %c16_50 = arith.constant 16 : index
    %c0_51 = arith.constant 0 : index
    %83 = vector.load %arg11[%c2_49, %c16_50, %c0_51] : memref<6x33x128xbf16, #tpu.memory_space<vmem>>, vector<4x16x128xbf16>
    %84 = arith.extf %83 : vector<4x16x128xbf16> to vector<4x16x128xf32>
    %c7 = arith.constant 7 : index
    %c0_52 = arith.constant 0 : index
    %85 = vector.load %arg5[%c7, %c0_52] : memref<9x128xf32, #tpu.memory_space<vmem>>, vector<1x128xf32>
    %86 = vector.shape_cast %85 : vector<1x128xf32> to vector<1x1x128xf32>
    %87 = vector.broadcast %86 : vector<1x1x128xf32> to vector<4x16x128xf32>
    %88 = arith.mulf %84, %87 : vector<4x16x128xf32>
    %89 = arith.addf %82, %88 : vector<4x16x128xf32>
    %c2_53 = arith.constant 2 : index
    %c17_54 = arith.constant 17 : index
    %c0_55 = arith.constant 0 : index
    %90 = vector.load %arg11[%c2_53, %c17_54, %c0_55] : memref<6x33x128xbf16, #tpu.memory_space<vmem>>, vector<4x16x128xbf16>
    %91 = arith.extf %90 : vector<4x16x128xbf16> to vector<4x16x128xf32>
    %c8 = arith.constant 8 : index
    %c0_56 = arith.constant 0 : index
    %92 = vector.load %arg5[%c8, %c0_56] : memref<9x128xf32, #tpu.memory_space<vmem>>, vector<1x128xf32>
    %93 = vector.shape_cast %92 : vector<1x128xf32> to vector<1x1x128xf32>
    %94 = vector.broadcast %93 : vector<1x1x128xf32> to vector<4x16x128xf32>
    %95 = arith.mulf %91, %94 : vector<4x16x128xf32>
    %96 = arith.addf %89, %95 : vector<4x16x128xf32>
    %97 = vector.shape_cast %96 : vector<4x16x128xf32> to vector<64x128xf32>
    %98 = arith.truncf %97 : vector<64x128xf32> to vector<64x128xbf16>
    %c0_57 = arith.constant 0 : index
    %c0_58 = arith.constant 0 : index
    %99 = vector.load %arg7[%c0_57, %c0_58] : memref<128x128xbf16, #tpu.memory_space<vmem>>, vector<128x128xbf16>
    %cst_59 = arith.constant dense<0.000000e+00> : vector<64x128xf32>
    %100 = tpu.matmul %98, %99, %cst_59 {dimension_numbers = #tpu.dot_dimension_numbers<[1], [0], [0], [1], [0, 0, 1, 1], [], []>} : vector<64x128xbf16>, vector<128x128xbf16>, vector<64x128xf32> -> vector<64x128xf32>
    %c0_60 = arith.constant 0 : index
    %c0_61 = arith.constant 0 : index
    %101 = vector.load %arg8[%c0_60, %c0_61] : memref<1x128xf32, #tpu.memory_space<vmem>>, vector<1x128xf32>
    %102 = vector.broadcast %101 : vector<1x128xf32> to vector<64x128xf32>
    %103 = arith.addf %100, %102 : vector<64x128xf32>
    %cst_62 = arith.constant 3.000000e+00 : f32
    %104 = vector.broadcast %cst_62 : f32 to vector<64x128xf32>
    %105 = arith.addf %103, %104 : vector<64x128xf32>
    %cst_63 = arith.constant 0.000000e+00 : f32
    %cst_64 = arith.constant 6.000000e+00 : f32
    %106 = vector.broadcast %cst_63 : f32 to vector<64x128xf32>
    %107 = arith.maximumf %106, %105 : vector<64x128xf32>
    %108 = vector.broadcast %cst_64 : f32 to vector<64x128xf32>
    %109 = arith.minimumf %108, %107 : vector<64x128xf32>
    %110 = arith.mulf %103, %109 : vector<64x128xf32>
    %cst_65 = arith.constant 0.166666672 : f32
    %111 = vector.broadcast %cst_65 : f32 to vector<64x128xf32>
    %112 = arith.mulf %110, %111 : vector<64x128xf32>
    %cst_66 = arith.constant dense<0.000000e+00> : vector<128xf32>
    %113 = vector.multi_reduction <add>, %112, %cst_66 [0] : vector<64x128xf32> to vector<128xf32>
    %114 = vector.shape_cast %113 : vector<128xf32> to vector<1x128xf32>
    %cst_67 = arith.constant 3.906250e-03 : f32
    %115 = vector.broadcast %cst_67 : f32 to vector<1x128xf32>
    %116 = arith.mulf %114, %115 : vector<1x128xf32>
    %c0_68 = arith.constant 0 : index
    %c0_69 = arith.constant 0 : index
    %c0_70 = arith.constant 0 : index
    %c0_71 = arith.constant 0 : index
    %117 = vector.load %arg10[%c0_68, %c0_69, %c0_70, %c0_71] : memref<1x1x1x128xf32, #tpu.memory_space<vmem>>, vector<1x1x1x128xf32>
    %118 = vector.shape_cast %117 : vector<1x1x1x128xf32> to vector<1x128xf32>
    %119 = vector.shape_cast %116 : vector<1x128xf32> to vector<1x1x1x128xf32>
    tpu.vector_store %arg10[%c0_68, %c0_69, %c0_70, %c0_71], %119 {strides = array<i32>} : memref<1x1x1x128xf32, #tpu.memory_space<vmem>>, vector<1x1x1x128xf32>,
    %120 = vector.shape_cast %112 : vector<64x128xf32> to vector<4x16x128xf32>
    %121 = arith.truncf %120 : vector<4x16x128xf32> to vector<4x16x128xbf16>
    %c0_72 = arith.constant 0 : index
    %c0_73 = arith.constant 0 : index
    %c0_74 = arith.constant 0 : index
    %c0_75 = arith.constant 0 : index
    %122 = vector.load %arg9[%c0_72, %c0_73, %c0_74, %c0_75] : memref<1x4x16x128xbf16, #tpu.memory_space<vmem>>, vector<1x4x16x128xbf16>
    %123 = vector.shape_cast %122 : vector<1x4x16x128xbf16> to vector<4x16x128xbf16>
    %124 = vector.shape_cast %121 : vector<4x16x128xbf16> to vector<1x4x16x128xbf16>
    tpu.vector_store %arg9[%c0_72, %c0_73, %c0_74, %c0_75], %124 {strides = array<i32>} : memref<1x4x16x128xbf16, #tpu.memory_space<vmem>>, vector<1x4x16x128xbf16>,
    return
  }
  func.func @transform_0(%arg0: i32, %arg1: i32) -> (i32, i32, i32, i32) {
    %c0_i32 = arith.constant 0 : i32
    %c0_i32_0 = arith.constant 0 : i32
    %c0_i32_1 = arith.constant 0 : i32
    %c0_i32_2 = arith.constant 0 : i32
    return %arg0, %c0_i32, %c0_i32_0, %c0_i32_1 : i32, i32, i32, i32
  }
  func.func @transform_1(%arg0: i32, %arg1: i32) -> (i32, i32) {
    %c0_i32 = arith.constant 0 : i32
    %c0_i32_0 = arith.constant 0 : i32
    %c0_i32_1 = arith.constant 0 : i32
    return %c0_i32, %c0_i32_0 : i32, i32
  }
  func.func @transform_2(%arg0: i32, %arg1: i32) -> (i32, i32) {
    %c0_i32 = arith.constant 0 : i32
    %c0_i32_0 = arith.constant 0 : i32
    %c0_i32_1 = arith.constant 0 : i32
    return %c0_i32, %c0_i32_0 : i32, i32
  }
  func.func @transform_3(%arg0: i32, %arg1: i32) -> (i32, i32) {
    %c0_i32 = arith.constant 0 : i32
    %c0_i32_0 = arith.constant 0 : i32
    %c0_i32_1 = arith.constant 0 : i32
    return %c0_i32, %c0_i32_0 : i32, i32
  }
  func.func @transform_4(%arg0: i32, %arg1: i32) -> (i32, i32) {
    %c0_i32 = arith.constant 0 : i32
    %c0_i32_0 = arith.constant 0 : i32
    %c0_i32_1 = arith.constant 0 : i32
    return %c0_i32, %c0_i32_0 : i32, i32
  }
  func.func @transform_5(%arg0: i32, %arg1: i32) -> (i32, i32) {
    %c0_i32 = arith.constant 0 : i32
    %c0_i32_0 = arith.constant 0 : i32
    %c0_i32_1 = arith.constant 0 : i32
    return %c0_i32, %c0_i32_0 : i32, i32
  }
  func.func @transform_6(%arg0: i32, %arg1: i32) -> (i32, i32) {
    %c0_i32 = arith.constant 0 : i32
    %c0_i32_0 = arith.constant 0 : i32
    %c0_i32_1 = arith.constant 0 : i32
    return %c0_i32, %c0_i32_0 : i32, i32
  }
  func.func @transform_7(%arg0: i32, %arg1: i32) -> (i32, i32, i32, i32) {
    %c0_i32 = arith.constant 0 : i32
    %c0_i32_0 = arith.constant 0 : i32
    %c0_i32_1 = arith.constant 0 : i32
    return %arg0, %arg1, %c0_i32, %c0_i32_0 : i32, i32, i32, i32
  }
  func.func @transform_8(%arg0: i32, %arg1: i32) -> (i32, i32, i32, i32) {
    %c0_i32 = arith.constant 0 : i32
    %c0_i32_0 = arith.constant 0 : i32
    %c0_i32_1 = arith.constant 0 : i32
    return %arg0, %arg1, %c0_i32, %c0_i32_0 : i32, i32, i32, i32
  }
}

</mosaic_0001>

<llo_original>
// kernel: tpu_custom_call.1
$region0: #{tpu_custom_call.1}
  #allocation0 [shape = 'u32[]', space=smem, size = 0x4, offset = 0x4, fixed_abs, tag = 'smem constant byte address 0x4 - core index']
  #allocation1 [shape = 'u32[144,128]{1,0:T(1,128)}', space=vmem, size = 0x12000, scoped, tag = 'internal scratch']
  #allocation2 [shape = 'bf16[6,33,128]{2,1,0:T(8,128)(2,1)}', space=vmem, size = 0xf000, scoped, tag = 'scratch operand']
  %s0 = inlined_call_operand.hbm [shape: bf16[2,18,16,128], index: 0, kind: input, shape index: {}]
  %s1 = inlined_call_operand.hbm [shape: bf16[128,128], index: 1, kind: input, shape index: {}]
  %s2 = inlined_call_operand.vmem [shape: f32[1,128], index: 2, kind: input, shape index: {}]
  %s3 = inlined_call_operand.hbm [shape: f32[9,128], index: 3, kind: input, shape index: {}]
  %s4 = inlined_call_operand.vmem [shape: f32[1,128], index: 4, kind: input, shape index: {}]
  %s5 = inlined_call_operand.hbm [shape: bf16[128,128], index: 5, kind: input, shape index: {}]
  %s6 = inlined_call_operand.vmem [shape: f32[1,128], index: 6, kind: input, shape index: {}]
  %s7 = inlined_call_operand.hbm [shape: bf16[2,16,16,128], index: 7, kind: output, shape index: {0}]
  %s8 = inlined_call_operand.hbm [shape: f32[2,4,1,128], index: 8, kind: output, shape index: {1}]
  %9 = xla_tuple %s7, %s8
  %s10 = sld [smem:[#allocation0]]
  $region93: #{tpu_custom_call.1} parent=0
    _
  %s12 = ssub.s32 1, %s10
  %s13 = scalar_select 0, %s12, %s10
  $region1: #{tpu_custom_call.1} parent=0
    #allocation3 [shape = 'u8[147456]{0}', space=vmem, size = 0x24000, scoped, tag = 'input window, operand 0']
    #allocation4 [shape = 's32[2]{0}', space=sflag, size = 0x8, scoped, tag = 'scoped memory for tpu_custom_call.1']
    #allocation5 [shape = 's32[2]{0}', space=sflag, size = 0x8, scoped, tag = 'scoped memory for tpu_custom_call.1']
    #allocation6 [shape = 'u8[32768]{0}', space=vmem, size = 0x8000, scoped, tag = 'input window, operand 1, single buffered']
    #allocation7 [shape = 's32[1]{0}', space=sflag, size = 0x4, scoped, tag = 'scoped memory for tpu_custom_call.1']
    #allocation8 [shape = 'u8[8192]{0}', space=vmem, size = 0x2000, scoped, tag = 'input window, operand 3, single buffered']
    #allocation9 [shape = 'u8[32768]{0}', space=vmem, size = 0x8000, scoped, tag = 'input window, operand 5, single buffered']
    #allocation10 [shape = 's32[1]{0}', space=sflag, size = 0x4, scoped, tag = 'scoped memory for tpu_custom_call.1']
    #allocation11 [shape = 'u8[32768]{0}', space=vmem, size = 0x8000, scoped, tag = 'output window, operand 0']
    #allocation12 [shape = 'u8[1024]{0}', space=vmem, size = 0x400, scoped, tag = 'output window, operand 1']
    #allocation13 [shape = 's32[2]{0}', space=sflag, size = 0x8, scoped, tag = 'scoped memory for tpu_custom_call.1']
    %14 = vsyncpa [#allocation4], 0
    %s15 = scalar_lea.sflag [#allocation4], 1
    %16 = vsyncpa %s15, 0
    %17 = vsyncpa [#allocation7], 0
    %18 = vsyncpa [#allocation10], 0
    %19 = vsyncpa [#allocation5], 0
    %s20 = scalar_lea.sflag [#allocation5], 1
    %21 = vsyncpa %s20, 0
    %22 = vsyncpa [#allocation13], 0
    %s23 = scalar_lea.sflag [#allocation13], 1
    %24 = vsyncpa %s23, 0
    loop: start=0, step=1, limit=10
    $region2: #{tpu_custom_call.1} parent=1 // loop_pre_header
      _
    $region3: #{tpu_custom_call.1} parent=1 // loop_header
      %s26 = sphi 0, %s30
      %p27 = scmp.ge.s32.totalorder %s26, 10
      %s33 = sphi 0, %s45
      %s34 = sphi 0, %s41
      %s35 = sphi 0, %s33
      %s36 = sphi 0, %s34
      %s37 = sphi 0, %s35
      %s38 = sphi 0, %s36
      %s48 = sphi 0, %s50
      %s51 = sphi 0, %s48
      %s52 = sphi 0, %s51
      %s68 = sphi 0, %s52
      %s72 = sphi 0, %s72
      %s74 = sphi 0, %s72
      %s75 = sphi 0, %s74
      %s89 = sphi 0, %s75
      %s93 = sphi 0, %s93
      %s95 = sphi 0, %s93
      %s96 = sphi 0, %s95
      %s110 = sphi 0, %s96
      %s114 = sphi 0, %s114
      %s116 = sphi 0, %s114
      %s117 = sphi 0, %s116
      %s131 = sphi 0, %s117
      %s135 = sphi 0, %s135
      %s137 = sphi 0, %s135
      %s138 = sphi 0, %s137
      %s152 = sphi 0, %s138
      %s156 = sphi 0, %s156
      %s158 = sphi 0, %s156
      %s159 = sphi 0, %s158
      %s173 = sphi 0, %s159
      %s177 = sphi 0, %s177
      %s179 = sphi 0, %s177
      %s180 = sphi 0, %s179
      %s194 = sphi 0, %s180
      %s202 = sphi 0, %s204
      %s205 = sphi 0, %s202
      %s206 = sphi 0, %s205
      %s222 = sphi 0, %s206
      %s230 = sphi 0, %s232
      %s233 = sphi 0, %s230
      %s234 = sphi 0, %s233
      %s250 = sphi 0, %s234
    $region4: #{tpu_custom_call.1} parent=1 // loop_header_branch
      %29 = sbr.rel (%p27) target = $region8
    $region5: #{tpu_custom_call.1} parent=1 // loop_body
      %s31 = ssub.s32 %s26, 1
      %s32 = ssub.s32 %s26, 2
      %s39 = sadd.s32 1, %s34
      %p40 = scmp.ge.s32.totalorder %s39, 4
      %s41 = scalar_select %p40, 0, %s39
      %s42 = sadd.s32 1, %s33
      %s43 = scalar_select %p40, %s42, %s33
      %p44 = scmp.ge.s32.totalorder %s43, 2
      %s45 = scalar_select %p44, 0, %s43
      %s46 = ssub.s32 %s33, %s45
      %p47 = scmp.eq.s32.totalorder %s46, 0
      %s49 = sadd.s32 %s48, 1
      %s50 = scalar_select %p47, %s48, %s49
      %p53 = pneg %p47
      %p54 = scmp.eq.s32.totalorder %s26, 7
      %p55 = por %p53, %p54
      %p56 = scmp.ne.s32.totalorder %s48, %s51
      %p57 = scmp.eq.s32.totalorder %s26, 0
      %p58 = por %p56, %p57
      %p59 = scmp.ne.s32.totalorder %s48, %s51
      %p60 = scmp.eq.s32.totalorder %s31, 7
      %p61 = por %p59, %p60
      %p62 = scmp.ne.s32.totalorder %s51, %s52
      %p63 = scmp.eq.s32.totalorder %s31, 0
      %p64 = por %p62, %p63
      %p65 = scmp.ne.s32.totalorder %s51, %s52
      %p66 = scmp.eq.s32.totalorder %s32, 7
      %p67 = por %p65, %p66
      %p69 = scmp.ne.s32.totalorder %s52, %s68
      %p70 = scmp.eq.s32.totalorder %s32, 0
      %p71 = por %p69, %p70
      %s73 = sadd.s32 %s72, 1
      %p76 = scmp.eq.s32.totalorder %s26, 7
      %p77 = scmp.ne.s32.totalorder %s72, %s74
      %p78 = scmp.eq.s32.totalorder %s26, 0
      %p79 = por %p77, %p78
      %p80 = scmp.ne.s32.totalorder %s72, %s74
      %p81 = scmp.eq.s32.totalorder %s31, 7
      %p82 = por %p80, %p81
      %p83 = scmp.ne.s32.totalorder %s74, %s75
      %p84 = scmp.eq.s32.totalorder %s31, 0
      %p85 = por %p83, %p84
      %p86 = scmp.ne.s32.totalorder %s74, %s75
      %p87 = scmp.eq.s32.totalorder %s32, 7
      %p88 = por %p86, %p87
      %p90 = scmp.ne.s32.totalorder %s75, %s89
      %p91 = scmp.eq.s32.totalorder %s32, 0
      %p92 = por %p90, %p91
      %s94 = sadd.s32 %s93, 1
      %p97 = scmp.eq.s32.totalorder %s26, 7
      %p98 = scmp.ne.s32.totalorder %s93, %s95
      %p99 = scmp.eq.s32.totalorder %s26, 0
      %p100 = por %p98, %p99
      %p101 = scmp.ne.s32.totalorder %s93, %s95
      %p102 = scmp.eq.s32.totalorder %s31, 7
      %p103 = por %p101, %p102
      %p104 = scmp.ne.s32.totalorder %s95, %s96
      %p105 = scmp.eq.s32.totalorder %s31, 0
      %p106 = por %p104, %p105
      %p107 = scmp.ne.s32.totalorder %s95, %s96
      %p108 = scmp.eq.s32.totalorder %s32, 7
      %p109 = por %p107, %p108
      %p111 = scmp.ne.s32.totalorder %s96, %s110
      %p112 = scmp.eq.s32.totalorder %s32, 0
      %p113 = por %p111, %p112
      %s115 = sadd.s32 %s114, 1
      %p118 = scmp.eq.s32.totalorder %s26, 7
      %p119 = scmp.ne.s32.totalorder %s114, %s116
      %p120 = scmp.eq.s32.totalorder %s26, 0
      %p121 = por %p119, %p120
      %p122 = scmp.ne.s32.totalorder %s114, %s116
      %p123 = scmp.eq.s32.totalorder %s31, 7
      %p124 = por %p122, %p123
      %p125 = scmp.ne.s32.totalorder %s116, %s117
      %p126 = scmp.eq.s32.totalorder %s31, 0
      %p127 = por %p125, %p126
      %p128 = scmp.ne.s32.totalorder %s116, %s117
      %p129 = scmp.eq.s32.totalorder %s32, 7
      %p130 = por %p128, %p129
      %p132 = scmp.ne.s32.totalorder %s117, %s131
      %p133 = scmp.eq.s32.totalorder %s32, 0
      %p134 = por %p132, %p133
      %s136 = sadd.s32 %s135, 1
      %p139 = scmp.eq.s32.totalorder %s26, 7
      %p140 = scmp.ne.s32.totalorder %s135, %s137
      %p141 = scmp.eq.s32.totalorder %s26, 0
      %p142 = por %p140, %p141
      %p143 = scmp.ne.s32.totalorder %s135, %s137
      %p144 = scmp.eq.s32.totalorder %s31, 7
      %p145 = por %p143, %p144
      %p146 = scmp.ne.s32.totalorder %s137, %s138
      %p147 = scmp.eq.s32.totalorder %s31, 0
      %p148 = por %p146, %p147
      %p149 = scmp.ne.s32.totalorder %s137, %s138
      %p150 = scmp.eq.s32.totalorder %s32, 7
      %p151 = por %p149, %p150
      %p153 = scmp.ne.s32.totalorder %s138, %s152
      %p154 = scmp.eq.s32.totalorder %s32, 0
      %p155 = por %p153, %p154
      %s157 = sadd.s32 %s156, 1
      %p160 = scmp.eq.s32.totalorder %s26, 7
      %p161 = scmp.ne.s32.totalorder %s156, %s158
      %p162 = scmp.eq.s32.totalorder %s26, 0
      %p163 = por %p161, %p162
      %p164 = scmp.ne.s32.totalorder %s156, %s158
      %p165 = scmp.eq.s32.totalorder %s31, 7
      %p166 = por %p164, %p165
      %p167 = scmp.ne.s32.totalorder %s158, %s159
      %p168 = scmp.eq.s32.totalorder %s31, 0
      %p169 = por %p167, %p168
      %p170 = scmp.ne.s32.totalorder %s158, %s159
      %p171 = scmp.eq.s32.totalorder %s32, 7
      %p172 = por %p170, %p171
      %p174 = scmp.ne.s32.totalorder %s159, %s173
      %p175 = scmp.eq.s32.totalorder %s32, 0
      %p176 = por %p174, %p175
      %s178 = sadd.s32 %s177, 1
      %p181 = scmp.eq.s32.totalorder %s26, 7
      %p182 = scmp.ne.s32.totalorder %s177, %s179
      %p183 = scmp.eq.s32.totalorder %s26, 0
      %p184 = por %p182, %p183
      %p185 = scmp.ne.s32.totalorder %s177, %s179
      %p186 = scmp.eq.s32.totalorder %s31, 7
      %p187 = por %p185, %p186
      %p188 = scmp.ne.s32.totalorder %s179, %s180
      %p189 = scmp.eq.s32.totalorder %s31, 0
      %p190 = por %p188, %p189
      %p191 = scmp.ne.s32.totalorder %s179, %s180
      %p192 = scmp.eq.s32.totalorder %s32, 7
      %p193 = por %p191, %p192
      %p195 = scmp.ne.s32.totalorder %s180, %s194
      %p196 = scmp.eq.s32.totalorder %s32, 0
      %p197 = por %p195, %p196
      %s198 = ssub.s32 %s33, %s45
      %s199 = ssub.s32 %s34, %s41
      %s200 = sor.u32 %s198, %s199
      %p201 = scmp.eq.s32.totalorder %s200, 0
      %s203 = sadd.s32 %s202, 1
      %s204 = scalar_select %p201, %s202, %s203
      %p207 = pneg %p201
      %p208 = scmp.eq.s32.totalorder %s26, 7
      %p209 = por %p207, %p208
      %p210 = scmp.ne.s32.totalorder %s202, %s205
      %p211 = scmp.eq.s32.totalorder %s26, 0
      %p212 = por %p210, %p211
      %p213 = scmp.ne.s32.totalorder %s202, %s205
      %p214 = scmp.eq.s32.totalorder %s31, 7
      %p215 = por %p213, %p214
      %p216 = scmp.ne.s32.totalorder %s205, %s206
      %p217 = scmp.eq.s32.totalorder %s31, 0
      %p218 = por %p216, %p217
      %p219 = scmp.ne.s32.totalorder %s205, %s206
      %p220 = scmp.eq.s32.totalorder %s32, 7
      %p221 = por %p219, %p220
      %p223 = scmp.ne.s32.totalorder %s206, %s222
      %p224 = scmp.eq.s32.totalorder %s32, 0
      %p225 = por %p223, %p224
      %s226 = ssub.s32 %s33, %s45
      %s227 = ssub.s32 %s34, %s41
      %s228 = sor.u32 %s226, %s227
      %p229 = scmp.eq.s32.totalorder %s228, 0
      %s231 = sadd.s32 %s230, 1
      %s232 = scalar_select %p229, %s230, %s231
      %p235 = pneg %p229
      %p236 = scmp.eq.s32.totalorder %s26, 7
      %p237 = por %p235, %p236
      %p238 = scmp.ne.s32.totalorder %s230, %s233
      %p239 = scmp.eq.s32.totalorder %s26, 0
      %p240 = por %p238, %p239
      %p241 = scmp.ne.s32.totalorder %s230, %s233
      %p242 = scmp.eq.s32.totalorder %s31, 7
      %p243 = por %p241, %p242
      %p244 = scmp.ne.s32.totalorder %s233, %s234
      %p245 = scmp.eq.s32.totalorder %s31, 0
      %p246 = por %p244, %p245
      %p247 = scmp.ne.s32.totalorder %s233, %s234
      %p248 = scmp.eq.s32.totalorder %s32, 7
      %p249 = por %p247, %p248
      %p251 = scmp.ne.s32.totalorder %s234, %s250
      %p252 = scmp.eq.s32.totalorder %s32, 0
      %p253 = por %p251, %p252
      %p254 = scmp.le.s32.totalorder 1, %s26
      %p255 = scmp.lt.s32.totalorder %s26, 9
      %p256 = pnand %p254, %p255
      %p257 = pneg %p256
      // Predicated region
      $region9: #{tpu_custom_call.1} parent=5 // pred_check
        _
      $region10: #{tpu_custom_call.1} parent=5 // pred_check_branch
        %259 = sbr.rel (%p256) target = $region12
      $region11: #{tpu_custom_call.1} parent=5 // pred_region
        %s260 = ssub.s32 %s26, 1
        // Predicated region
        $region13: #{tpu_custom_call.1} parent=11 // pred_check
          %p261 = pneg %p85
        $region14: #{tpu_custom_call.1} parent=11 // pred_check_branch
          %263 = sbr.rel (%p261) target = $region16
        $region15: #{tpu_custom_call.1} parent=11 // pred_region
          %s265 = ssub.s32 1024, 1024
          %266 = vsyncadd [#allocation7], %s265
          %s267 = sshll.u32 [#allocation6], 4
          %s268 = int_to_ptr.vmem [resolvable:$true] %s267
          %273 = dma.hbm_to_vmem [thread:$0]  %s1, 1024, %s268, [#allocation7], 64, 64, 4
        $region16: #{tpu_custom_call.1} parent=11 // pred_fallthru
          _
        // Predicated region
        $region17: #{tpu_custom_call.1} parent=11 // pred_check
          %p274 = pneg %p106
        $region18: #{tpu_custom_call.1} parent=11 // pred_check_branch
          %276 = sbr.rel (%p274) target = $region20
        $region19: #{tpu_custom_call.1} parent=11 // pred_region
          _
        $region20: #{tpu_custom_call.1} parent=11 // pred_fallthru
          _
        // Predicated region
        $region21: #{tpu_custom_call.1} parent=11 // pred_check
          %p277 = pneg %p127
        $region22: #{tpu_custom_call.1} parent=11 // pred_check_branch
          %279 = sbr.rel (%p277) target = $region24
        $region23: #{tpu_custom_call.1} parent=11 // pred_region
          %s281 = ssub.s32 256, 256
          %282 = vsyncadd [#allocation7], %s281
          %s283 = sshll.u32 [#allocation8], 4
          %s284 = int_to_ptr.vmem [resolvable:$true] %s283
          %289 = dma.hbm_to_vmem [thread:$0]  %s3, 256, %s284, [#allocation7], 128, 128, 8
        $region24: #{tpu_custom_call.1} parent=11 // pred_fallthru
          _
        // Predicated region
        $region25: #{tpu_custom_call.1} parent=11 // pred_check
          %p290 = pneg %p148
        $region26: #{tpu_custom_call.1} parent=11 // pred_check_branch
          %292 = sbr.rel (%p290) target = $region28
        $region27: #{tpu_custom_call.1} parent=11 // pred_region
          _
        $region28: #{tpu_custom_call.1} parent=11 // pred_fallthru
          _
        // Predicated region
        $region29: #{tpu_custom_call.1} parent=11 // pred_check
          %p293 = pneg %p169
        $region30: #{tpu_custom_call.1} parent=11 // pred_check_branch
          %295 = sbr.rel (%p293) target = $region32
        $region31: #{tpu_custom_call.1} parent=11 // pred_region
          %s297 = ssub.s32 1024, 1024
          %298 = vsyncadd [#allocation10], %s297
          %s299 = sshll.u32 [#allocation9], 4
          %s300 = int_to_ptr.vmem [resolvable:$true] %s299
          %305 = dma.hbm_to_vmem [thread:$0]  %s5, 1024, %s300, [#allocation10], 64, 64, 4
        $region32: #{tpu_custom_call.1} parent=11 // pred_fallthru
          _
        // Predicated region
        $region33: #{tpu_custom_call.1} parent=11 // pred_check
          %p306 = pneg %p190
        $region34: #{tpu_custom_call.1} parent=11 // pred_check_branch
          %308 = sbr.rel (%p306) target = $region36
        $region35: #{tpu_custom_call.1} parent=11 // pred_region
          _
        $region36: #{tpu_custom_call.1} parent=11 // pred_fallthru
          _
      $region12: #{tpu_custom_call.1} parent=5 // pred_fallthru
        _
      %p309 = scmp.lt.s32.totalorder %s26, 8
      // Predicated region
      $region37: #{tpu_custom_call.1} parent=5 // pred_check
        %p310 = pneg %p309
      $region38: #{tpu_custom_call.1} parent=5 // pred_check_branch
        %312 = sbr.rel (%p310) target = $region40
      $region39: #{tpu_custom_call.1} parent=5 // pred_region
        // Predicated region
        $region41: #{tpu_custom_call.1} parent=39 // pred_check
          %p313 = pneg %p58
        $region42: #{tpu_custom_call.1} parent=39 // pred_check_branch
          %315 = sbr.rel (%p313) target = $region44
        $region43: #{tpu_custom_call.1} parent=39 // pred_region
          %s316 = sand.u32 %s48, 1
          %s317 = scalar_lea.sflag [#allocation4], %s316
          %s318 = sand.u32 %s48, 1
          %s319 = smul.addr %s318, 144
          %s320 = scalar_lea.vmem [#allocation3], %s319
          %s322 = ssub.s32 2304, 2304
          %323 = vsyncadd %s317, %s322
          %s324 = smul.addr %s33, 36
          %s325 = smul.addr %s324, 64
          %s326 = scalar_lea.hbm %s0, %s325
          %s327 = sshll.u32 %s320, 4
          %s328 = int_to_ptr.vmem [resolvable:$true] %s327
          %333 = dma.hbm_to_vmem [thread:$0]  %s326, 2304, %s328, %s317, 64, 64, 4
        $region44: #{tpu_custom_call.1} parent=39 // pred_fallthru
          _
      $region40: #{tpu_custom_call.1} parent=5 // pred_fallthru
        _
      %p334 = scmp.le.s32.totalorder 1, %s26
      %p335 = scmp.lt.s32.totalorder %s26, 9
      %p336 = pnand %p334, %p335
      %p337 = pneg %p336
      // Predicated region
      $region45: #{tpu_custom_call.1} parent=5 // pred_check
        _
      $region46: #{tpu_custom_call.1} parent=5 // pred_check_branch
        %339 = sbr.rel (%p336) target = $region48
      $region47: #{tpu_custom_call.1} parent=5 // pred_region
        %s340 = ssub.s32 %s26, 1
        %s341 = sand.u32 %s51, 1
        %s342 = scalar_lea.sflag [#allocation4], %s341
        %s343 = sand.u32 %s51, 1
        %s344 = smul.addr %s343, 144
        %s345 = scalar_lea.vmem [#allocation3], %s344
        // Predicated region
        $region49: #{tpu_custom_call.1} parent=47 // pred_check
          %p346 = pneg %p64
        $region50: #{tpu_custom_call.1} parent=47 // pred_check_branch
          %348 = sbr.rel (%p346) target = $region52
        $region51: #{tpu_custom_call.1} parent=47 // pred_region
          %349 = dma.done %s342, 2304
        $region52: #{tpu_custom_call.1} parent=47 // pred_fallthru
          _
        // Predicated region
        $region53: #{tpu_custom_call.1} parent=47 // pred_check
          %p350 = pneg %p85
        $region54: #{tpu_custom_call.1} parent=47 // pred_check_branch
          %352 = sbr.rel (%p350) target = $region56
        $region55: #{tpu_custom_call.1} parent=47 // pred_region
          %353 = dma.done [#allocation7], 1024
        $region56: #{tpu_custom_call.1} parent=47 // pred_fallthru
          _
        // Predicated region
        $region57: #{tpu_custom_call.1} parent=47 // pred_check
          %p354 = pneg %p127
        $region58: #{tpu_custom_call.1} parent=47 // pred_check_branch
          %356 = sbr.rel (%p354) target = $region60
        $region59: #{tpu_custom_call.1} parent=47 // pred_region
          %357 = dma.done [#allocation7], 256
        $region60: #{tpu_custom_call.1} parent=47 // pred_fallthru
          _
        // Predicated region
        $region61: #{tpu_custom_call.1} parent=47 // pred_check
          %p358 = pneg %p169
        $region62: #{tpu_custom_call.1} parent=47 // pred_check_branch
          %360 = sbr.rel (%p358) target = $region64
        $region63: #{tpu_custom_call.1} parent=47 // pred_region
          %361 = dma.done [#allocation10], 1024
        $region64: #{tpu_custom_call.1} parent=47 // pred_fallthru
          _
        %s362 = sand.u32 %s51, 1
        %s363 = scalar_lea.sflag [#allocation4], %s362
        %s364 = sand.u32 %s51, 1
        %s365 = smul.addr %s364, 144
        %s366 = scalar_lea.vmem [#allocation3], %s365
        %p367 = pneg %p64
        %p368 = pneg %p61
        %p369 = pneg %p85
        %p370 = pneg %p82
        %p371 = pneg %p106
        %p372 = pneg %p103
        %p373 = pneg %p127
        %p374 = pneg %p124
        %p375 = pneg %p148
        %p376 = pneg %p145
        %p377 = pneg %p169
        %p378 = pneg %p166
        %p379 = pneg %p190
        %p380 = pneg %p187
        %p381 = pneg %p218
        %p382 = pneg %p215
        %s383 = sand.u32 %s205, 1
        %s384 = scalar_lea.sflag [#allocation5], %s383
        %s385 = sand.u32 %s205, 1
        %s386 = smul.addr %s385, 32
        %s387 = scalar_lea.vmem [#allocation11], %s386
        %p388 = pneg %p246
        %p389 = pneg %p243
        %s390 = sand.u32 %s233, 1
        %s391 = scalar_lea.sflag [#allocation13], %s390
        %s392 = sand.u32 %s233, 1
        %s393 = scalar_lea.vmem [#allocation12], %s392
        %s394 = smul.u32 4, %s36
        %s396 = smul.u32 %s36, 4
        %s397 = smul.u32 %s396, 2
        %s398 = smul.addr %s397, 4
        %s399 = scalar_lea.vmem %s345, %s398 [#allocation3]
        %v400 = vld [vmem:[%s399] sm:$0xf]
        %v401 = vld [vmem:[%s399 + $0x4] sm:$0xf]
        %v402 = vld [vmem:[%s399 + $0x8] sm:$0xf]
        %v403 = vld [vmem:[%s399 + $0xc] sm:$0xf]
        %v404 = vld [vmem:[%s399 + $0x10] sm:$0xf]
        %v405 = vld [vmem:[%s399 + $0x14] sm:$0xf]
        %v406 = vld [vmem:[%s399 + $0x18] sm:$0xf]
        %v407 = vld [vmem:[%s399 + $0x1c] sm:$0xf]
        %v408 = vld [vmem:[%s399 + $0x20] sm:$0xf]
        %v409 = vld [vmem:[%s399 + $0x24] sm:$0xf]
        %v410 = vld [vmem:[%s399 + $0x28] sm:$0xf]
        %v411 = vld [vmem:[%s399 + $0x2c] sm:$0xf]
        %v412 = vld [vmem:[#allocation6] sm:$0xf]
        %v413 = vld [vmem:[#allocation6 + $0x4] sm:$0xf]
        %v414 = vld [vmem:[#allocation6 + $0x8] sm:$0xf]
        %v415 = vld [vmem:[#allocation6 + $0xc] sm:$0xf]
        %v416 = vld [vmem:[#allocation6 + $0x10] sm:$0xf]
        %v417 = vld [vmem:[#allocation6 + $0x14] sm:$0xf]
        %v418 = vld [vmem:[#allocation6 + $0x18] sm:$0xf]
        %v419 = vld [vmem:[#allocation6 + $0x1c] sm:$0xf]
        %v420 = vld [vmem:[#allocation6 + $0x20] sm:$0xf]
        %v421 = vld [vmem:[#allocation6 + $0x24] sm:$0xf]
        %v422 = vld [vmem:[#allocation6 + $0x28] sm:$0xf]
        %v423 = vld [vmem:[#allocation6 + $0x2c] sm:$0xf]
        %v424 = vld [vmem:[#allocation6 + $0x30] sm:$0xf]
        %v425 = vld [vmem:[#allocation6 + $0x34] sm:$0xf]
        %v426 = vld [vmem:[#allocation6 + $0x38] sm:$0xf]
        %v427 = vld [vmem:[#allocation6 + $0x3c] sm:$0xf]
        %v428 = vld [vmem:[%s2] sm:$0x1]
        %v430 = vlaneseq
        %v431 = vshrl.u32 %v430, 7
        %v432 = vsub.s32 0, %v431
        %v433 = vrot.slane %v428, %v432
        %v447 = vunpack.c.l.b16 %v400
        %v448 = vunpack.c.l.b16 %v401
        %v449 = vunpack.c.l.b16 %v402
        %v450 = vunpack.c.l.b16 %v403
        %v451 = vunpack.c.l.b16 %v404
        %v452 = vunpack.c.l.b16 %v405
        %v453 = vunpack.c.l.b16 %v406
        %v454 = vunpack.c.l.b16 %v407
        %v455 = vunpack.c.l.b16 %v408
        %v456 = vunpack.c.l.b16 %v409
        %v457 = vunpack.c.l.b16 %v410
        %v458 = vunpack.c.l.b16 %v411
        %v459 = vpack.c.b16 %v448, %v447
        %v460 = vpack.c.b16 %v450, %v449
        %v461 = vpack.c.b16 %v452, %v451
        %v462 = vpack.c.b16 %v454, %v453
        %v463 = vpack.c.b16 %v456, %v455
        %v464 = vpack.c.b16 %v458, %v457
        %v487 = vunpack.c.l.b16 %v412
        %v488 = vunpack.c.l.b16 %v413
        %v489 = vunpack.c.l.b16 %v414
        %v490 = vunpack.c.l.b16 %v415
        %v491 = vunpack.c.l.b16 %v416
        %v492 = vunpack.c.l.b16 %v417
        %v493 = vunpack.c.l.b16 %v418
        %v494 = vunpack.c.l.b16 %v419
        %v495 = vunpack.c.l.b16 %v420
        %v496 = vunpack.c.l.b16 %v421
        %v497 = vunpack.c.l.b16 %v422
        %v498 = vunpack.c.l.b16 %v423
        %v499 = vunpack.c.l.b16 %v424
        %v500 = vunpack.c.l.b16 %v425
        %v501 = vunpack.c.l.b16 %v426
        %v502 = vunpack.c.l.b16 %v427
        %v503 = vpack.c.b16 %v488, %v487
        %v504 = vpack.c.b16 %v490, %v489
        %v505 = vpack.c.b16 %v492, %v491
        %v506 = vpack.c.b16 %v494, %v493
        %v507 = vpack.c.b16 %v496, %v495
        %v508 = vpack.c.b16 %v498, %v497
        %v509 = vpack.c.b16 %v500, %v499
        %v510 = vpack.c.b16 %v502, %v501
        %519 = vmatprep.subr.bf16.mxu0 0
        %520 = vmatpush1.bf16.msra.mxu0 %v510
        %521 = vmatprep.subr.bf16.mxu0 0
        %522 = vmatpush1.bf16.msra.mxu0 %v509
        %523 = vmatprep.subr.bf16.mxu0 0
        %524 = vmatpush1.bf16.msra.mxu0 %v508
        %525 = vmatprep.subr.bf16.mxu0 0
        %526 = vmatpush1.bf16.msra.mxu0 %v507
        %527 = vmatprep.subr.bf16.mxu0 0
        %528 = vmatpush1.bf16.msra.mxu0 %v506
        %529 = vmatprep.subr.bf16.mxu0 0
        %530 = vmatpush1.bf16.msra.mxu0 %v505
        %531 = vmatprep.subr.bf16.mxu0 0
        %532 = vmatpush1.bf16.msra.mxu0 %v504
        %533 = vmatprep.subr.bf16.mxu0 0
        %534 = vmatpush1.bf16.msra.mxu0 %v503
        %535 = vmatprep.subr.bf16.mxu0 0
        %536 = vmatpush2.bf16.msra.mxu0 0
        %537 = vmatprep.subr.bf16.mxu0 0
        %538 = vmatpush2.bf16.msra.mxu0 0
        %539 = vmatprep.subr.bf16.mxu0 0
        %540 = vmatpush2.bf16.msra.mxu0 0
        %541 = vmatprep.subr.bf16.mxu0 0
        %542 = vmatpush2.bf16.msra.mxu0 0
        %543 = vmatprep.subr.bf16.mxu0 0
        %544 = vmatpush2.bf16.msra.mxu0 0
        %545 = vmatprep.subr.bf16.mxu0 0
        %546 = vmatpush2.bf16.msra.mxu0 0
        %547 = vmatprep.subr.bf16.mxu0 0
        %548 = vmatpush2.bf16.msra.mxu0 0
        %549 = vmatprep.subr.bf16.mxu0 0
        %550 = vmatpush2.bf16.msra.mxu0 0
        %551 = vmatprep.mubr.bf16.mxu0 0
        %552 = vmatmul.mubr.bf16.gmra.mxu0 %v459
        %v553 = vpop.f32.mrf.mxu0
        %v554 = vadd.f32 %v433, %v553
        %v555 = vpop.f32.mrf.mxu0
        %v556 = vpop.f32.mrf.mxu0
        %v557 = vadd.f32 %v433, %v556
        %v558 = vpop.f32.mrf.mxu0
        %559 = vmatprep.mubr.bf16.mxu0 0
        %560 = vmatmul.mubr.bf16.gmra.mxu0 %v460
        %v561 = vpop.f32.mrf.mxu0
        %v562 = vadd.f32 %v433, %v561
        %v563 = vpop.f32.mrf.mxu0
        %v564 = vpop.f32.mrf.mxu0
        %v565 = vadd.f32 %v433, %v564
        %v566 = vpop.f32.mrf.mxu0
        %567 = vmatprep.mubr.bf16.mxu0 0
        %568 = vmatmul.mubr.bf16.gmra.mxu0 %v461
        %v569 = vpop.f32.mrf.mxu0
        %v570 = vadd.f32 %v433, %v569
        %v571 = vpop.f32.mrf.mxu0
        %v572 = vpop.f32.mrf.mxu0
        %v573 = vadd.f32 %v433, %v572
        %v574 = vpop.f32.mrf.mxu0
        %575 = vmatprep.mubr.bf16.mxu0 0
        %576 = vmatmul.mubr.bf16.gmra.mxu0 %v462
        %v577 = vpop.f32.mrf.mxu0
        %v578 = vadd.f32 %v433, %v577
        %v579 = vpop.f32.mrf.mxu0
        %v580 = vpop.f32.mrf.mxu0
        %v581 = vadd.f32 %v433, %v580
        %v582 = vpop.f32.mrf.mxu0
        %583 = vmatprep.mubr.bf16.mxu0 0
        %584 = vmatmul.mubr.bf16.gmra.mxu0 %v463
        %v585 = vpop.f32.mrf.mxu0
        %v586 = vadd.f32 %v433, %v585
        %v587 = vpop.f32.mrf.mxu0
        %v588 = vpop.f32.mrf.mxu0
        %v589 = vadd.f32 %v433, %v588
        %v590 = vpop.f32.mrf.mxu0
        %591 = vmatprep.mubr.bf16.mxu0 0
        %592 = vmatmul.mubr.bf16.gmra.mxu0 %v464
        %v593 = vpop.f32.mrf.mxu0
        %v594 = vadd.f32 %v433, %v593
        %v595 = vpop.f32.mrf.mxu0
        %v596 = vpop.f32.mrf.mxu0
        %v597 = vadd.f32 %v433, %v596
        %v598 = vpop.f32.mrf.mxu0
        %599 = vdwg.mxu0
        %v600 = vadd.f32 %v554, 3.0
        %v601 = vadd.f32 %v557, 3.0
        %v602 = vadd.f32 %v562, 3.0
        %v603 = vadd.f32 %v565, 3.0
        %v604 = vadd.f32 %v570, 3.0
        %v605 = vadd.f32 %v573, 3.0
        %v606 = vadd.f32 %v578, 3.0
        %v607 = vadd.f32 %v581, 3.0
        %v608 = vadd.f32 %v586, 3.0
        %v609 = vadd.f32 %v589, 3.0
        %v610 = vadd.f32 %v594, 3.0
        %v611 = vadd.f32 %v597, 3.0
        %v612 = vmax.f32 %v600, 0.0
        %v613 = vmax.f32 %v601, 0.0
        %v614 = vmax.f32 %v602, 0.0
        %v615 = vmax.f32 %v603, 0.0
        %v616 = vmax.f32 %v604, 0.0
        %v617 = vmax.f32 %v605, 0.0
        %v618 = vmax.f32 %v606, 0.0
        %v619 = vmax.f32 %v607, 0.0
        %v620 = vmax.f32 %v608, 0.0
        %v621 = vmax.f32 %v609, 0.0
        %v622 = vmax.f32 %v610, 0.0
        %v623 = vmax.f32 %v611, 0.0
        %v624 = vmin.f32 %v612, 6.0
        %v625 = vmin.f32 %v613, 6.0
        %v626 = vmin.f32 %v614, 6.0
        %v627 = vmin.f32 %v615, 6.0
        %v628 = vmin.f32 %v616, 6.0
        %v629 = vmin.f32 %v617, 6.0
        %v630 = vmin.f32 %v618, 6.0
        %v631 = vmin.f32 %v619, 6.0
        %v632 = vmin.f32 %v620, 6.0
        %v633 = vmin.f32 %v621, 6.0
        %v634 = vmin.f32 %v622, 6.0
        %v635 = vmin.f32 %v623, 6.0
        %v636 = vmul.f32 %v554, %v624
        %v637 = vmul.f32 %v557, %v625
        %v638 = vmul.f32 %v562, %v626
        %v639 = vmul.f32 %v565, %v627
        %v640 = vmul.f32 %v570, %v628
        %v641 = vmul.f32 %v573, %v629
        %v642 = vmul.f32 %v578, %v630
        %v643 = vmul.f32 %v581, %v631
        %v644 = vmul.f32 %v586, %v632
        %v645 = vmul.f32 %v589, %v633
        %v646 = vmul.f32 %v594, %v634
        %v647 = vmul.f32 %v597, %v635
        %v648 = vmul.f32 %v636, 0.16666667
        %v649 = vmul.f32 %v637, 0.16666667
        %v650 = vmul.f32 %v638, 0.16666667
        %v651 = vmul.f32 %v639, 0.16666667
        %v652 = vmul.f32 %v640, 0.16666667
        %v653 = vmul.f32 %v641, 0.16666667
        %v654 = vmul.f32 %v642, 0.16666667
        %v655 = vmul.f32 %v643, 0.16666667
        %v656 = vmul.f32 %v644, 0.16666667
        %v657 = vmul.f32 %v645, 0.16666667
        %v658 = vmul.f32 %v646, 0.16666667
        %v659 = vmul.f32 %v647, 0.16666667
        %v660 = vpack.c.bf16 %v649, %v648
        %v661 = vpack.c.bf16 %v651, %v650
        %v662 = vpack.c.bf16 %v653, %v652
        %v663 = vpack.c.bf16 %v655, %v654
        %v664 = vpack.c.bf16 %v657, %v656
        %v665 = vpack.c.bf16 %v659, %v658
        %v672 = vunpack.c.l.b16 %v660
        %v673 = vunpack.c.h.b16 %v660
        %v674 = vunpack.c.l.b16 %v661
        %v675 = vunpack.c.h.b16 %v661
        %v676 = vunpack.c.l.b16 %v662
        %v677 = vunpack.c.h.b16 %v662
        %v678 = vunpack.c.l.b16 %v663
        %v679 = vunpack.c.h.b16 %v663
        %v680 = vunpack.c.l.b16 %v664
        %v681 = vunpack.c.h.b16 %v664
        %v682 = vunpack.c.l.b16 %v665
        %v683 = vunpack.c.h.b16 %v665
        %v684 = vpack.c.b16 %v672, %v672
        %v685 = vpack.c.b16 %v673, %v673
        %v686 = vpack.c.b16 %v674, %v674
        %v687 = vpack.c.b16 %v675, %v675
        %v688 = vpack.c.b16 %v676, %v676
        %v689 = vpack.c.b16 %v677, %v677
        %v690 = vpack.c.b16 %v678, %v678
        %v691 = vpack.c.b16 %v679, %v679
        %v692 = vpack.c.b16 %v680, %v680
        %v693 = vpack.c.b16 %v681, %v681
        %v694 = vpack.c.b16 %v682, %v682
        %v695 = vpack.c.b16 %v683, %v683
        %708 = vst [vmem:[#allocation2 + $0x8] sm:$0xf] %v684
        %709 = vst [vmem:[#allocation2 + $0xc] sm:$0xf] %v685
        %710 = vst [vmem:[#allocation2 + $0x1c] sm:$0xf] %v686
        %711 = vst [vmem:[#allocation2 + $0x20] sm:$0xf] %v687
        %712 = vst [vmem:[#allocation2 + $0x30] sm:$0xf] %v688
        %713 = vst [vmem:[#allocation2 + $0x34] sm:$0xf] %v689
        %714 = vst [vmem:[#allocation2 + $0x44] sm:$0xf] %v690
        %715 = vst [vmem:[#allocation2 + $0x48] sm:$0xf] %v691
        %716 = vst [vmem:[#allocation2 + $0x58] sm:$0xf] %v692
        %717 = vst [vmem:[#allocation2 + $0x5c] sm:$0xf] %v693
        %718 = vst [vmem:[#allocation2 + $0x6c] sm:$0xf] %v694
        %719 = vst [vmem:[#allocation2 + $0x70] sm:$0xf] %v695
        %vm720 = vcmask 1043459
        %vm721 = vsmask.f32 7950
        %vm722 = vmand %vm720, %vm721
        %v723 = vld [vmem:[#allocation2 + $0x4] sm:$0x8]
        %v724 = vsel %vm722, 0, %v723
        %725 = vst [vmem:[#allocation2 + $0x4] sm:$0x8] %v724
        %v726 = vld [vmem:[#allocation2 + $0x18] sm:$0x8]
        %v727 = vsel %vm722, 0, %v726
        %728 = vst [vmem:[#allocation2 + $0x18] sm:$0x8] %v727
        %v729 = vld [vmem:[#allocation2 + $0x2c] sm:$0x8]
        %v730 = vsel %vm722, 0, %v729
        %731 = vst [vmem:[#allocation2 + $0x2c] sm:$0x8] %v730
        %v732 = vld [vmem:[#allocation2 + $0x40] sm:$0x8]
        %v733 = vsel %vm722, 0, %v732
        %734 = vst [vmem:[#allocation2 + $0x40] sm:$0x8] %v733
        %v735 = vld [vmem:[#allocation2 + $0x54] sm:$0x8]
        %v736 = vsel %vm722, 0, %v735
        %737 = vst [vmem:[#allocation2 + $0x54] sm:$0x8] %v736
        %v738 = vld [vmem:[#allocation2 + $0x68] sm:$0x8]
        %v739 = vsel %vm722, 0, %v738
        %740 = vst [vmem:[#allocation2 + $0x68] sm:$0x8] %v739
        %vm741 = vcmask 1040384
        %vm742 = vsmask.f32 256
        %vm743 = vmand %vm741, %vm742
        %v744 = vld [vmem:[#allocation2 + $0x10] sm:$0x1]
        %v745 = vsel %vm743, 0, %v744
        %746 = vst [vmem:[#allocation2 + $0x10] sm:$0x1] %v745
        %v747 = vld [vmem:[#allocation2 + $0x24] sm:$0x1]
        %v748 = vsel %vm743, 0, %v747
        %749 = vst [vmem:[#allocation2 + $0x24] sm:$0x1] %v748
        %v750 = vld [vmem:[#allocation2 + $0x38] sm:$0x1]
        %v751 = vsel %vm743, 0, %v750
        %752 = vst [vmem:[#allocation2 + $0x38] sm:$0x1] %v751
        %v753 = vld [vmem:[#allocation2 + $0x4c] sm:$0x1]
        %v754 = vsel %vm743, 0, %v753
        %755 = vst [vmem:[#allocation2 + $0x4c] sm:$0x1] %v754
        %v756 = vld [vmem:[#allocation2 + $0x60] sm:$0x1]
        %v757 = vsel %vm743, 0, %v756
        %758 = vst [vmem:[#allocation2 + $0x60] sm:$0x1] %v757
        %v759 = vld [vmem:[#allocation2 + $0x74] sm:$0x1]
        %v760 = vsel %vm743, 0, %v759
        %761 = vst [vmem:[#allocation2 + $0x74] sm:$0x1] %v760
        %p762 = scmp.eq.s32.totalorder %s36, 0
        // Predicated region
        $region65: #{tpu_custom_call.1} parent=47 // pred_check
          %p763 = pneg %p762
        $region66: #{tpu_custom_call.1} parent=47 // pred_check_branch
          %765 = sbr.rel (%p763) target = $region68
        $region67: #{tpu_custom_call.1} parent=47 // pred_region
          %766 = vst [vmem:[#allocation2] sm:$0xf] 0
          %767 = vst [vmem:[#allocation2 + $0x4] sm:$0xf] 0
          %768 = vst [vmem:[#allocation2 + $0x8] sm:$0xf] 0
          %769 = vst [vmem:[#allocation2 + $0xc] sm:$0xf] 0
          %v770 = vld [vmem:[#allocation2 + $0x10] sm:$0x1]
          %v771 = vsel %vm743, 0, %v770
          %772 = vst [vmem:[#allocation2 + $0x10] sm:$0x1] %v771
        $region68: #{tpu_custom_call.1} parent=47 // pred_fallthru
          _
        %p773 = scmp.eq.s32.totalorder %s36, 3
        // Predicated region
        $region69: #{tpu_custom_call.1} parent=47 // pred_check
          %p774 = pneg %p773
        $region70: #{tpu_custom_call.1} parent=47 // pred_check_branch
          %776 = sbr.rel (%p774) target = $region72
        $region71: #{tpu_custom_call.1} parent=47 // pred_region
          %s777 = scalar_lea.vmem [#allocation2], 100
          %778 = vst [vmem:[%s777] sm:$0xf] 0
          %779 = vst [vmem:[%s777 + $0x4] sm:$0xf] 0
          %780 = vst [vmem:[%s777 + $0x8] sm:$0xf] 0
          %781 = vst [vmem:[%s777 + $0xc] sm:$0xf] 0
          %v782 = vld [vmem:[%s777 + $0x10] sm:$0x1]
          %v783 = vsel %vm743, 0, %v782
          %784 = vst [vmem:[%s777 + $0x10] sm:$0x1] %v783
        $region72: #{tpu_custom_call.1} parent=47 // pred_fallthru
          _
        %v785 = vld [vmem:[#allocation2 + $0x4] sm:$0x8]
        %v786 = vld [vmem:[#allocation2 + $0x8] sm:$0xf]
        %v787 = vld [vmem:[#allocation2 + $0xc] sm:$0xf]
        %v788 = vld [vmem:[#allocation2 + $0x18] sm:$0x8]
        %v789 = vld [vmem:[#allocation2 + $0x1c] sm:$0xf]
        %v790 = vld [vmem:[#allocation2 + $0x20] sm:$0xf]
        %v791 = vld [vmem:[#allocation2 + $0x2c] sm:$0x8]
        %v792 = vld [vmem:[#allocation2 + $0x30] sm:$0xf]
        %v793 = vld [vmem:[#allocation2 + $0x34] sm:$0xf]
        %v794 = vld [vmem:[#allocation2 + $0x40] sm:$0x8]
        %v795 = vld [vmem:[#allocation2 + $0x44] sm:$0xf]
        %v796 = vld [vmem:[#allocation2 + $0x48] sm:$0xf]
        %v797 = vunpack.c.l.bf16 %v785
        %v798 = vunpack.c.l.bf16 %v786
        %v799 = vunpack.c.l.bf16 %v787
        %v800 = vunpack.c.l.bf16 %v788
        %v801 = vunpack.c.l.bf16 %v789
        %v802 = vunpack.c.l.bf16 %v790
        %v803 = vunpack.c.l.bf16 %v791
        %v804 = vunpack.c.l.bf16 %v792
        %v805 = vunpack.c.l.bf16 %v793
        %v806 = vunpack.c.l.bf16 %v794
        %v807 = vunpack.c.l.bf16 %v795
        %v808 = vunpack.c.l.bf16 %v796
        %v809 = vld [vmem:[#allocation8] sm:$0x1]
        %v810 = vlaneseq
        %v811 = vshrl.u32 %v810, 7
        %v812 = vsub.s32 0, %v811
        %v813 = vrot.slane %v809, %v812
        %v814 = vmul.f32 %v797, %v813
        %v815 = vmul.f32 %v798, %v813
        %v816 = vmul.f32 %v799, %v813
        %v817 = vmul.f32 %v800, %v813
        %v818 = vmul.f32 %v801, %v813
        %v819 = vmul.f32 %v802, %v813
        %v820 = vmul.f32 %v803, %v813
        %v821 = vmul.f32 %v804, %v813
        %v822 = vmul.f32 %v805, %v813
        %v823 = vmul.f32 %v806, %v813
        %v824 = vmul.f32 %v807, %v813
        %v825 = vmul.f32 %v808, %v813
        %v826 = vld [vmem:[%s4] sm:$0x1]
        %v828 = vlaneseq
        %v829 = vshrl.u32 %v828, 7
        %v830 = vsub.s32 0, %v829
        %v831 = vrot.slane %v826, %v830
        %v833 = vadd.f32 %v814, %v831
        %v834 = vadd.f32 %v815, %v831
        %v835 = vadd.f32 %v816, %v831
        %v836 = vadd.f32 %v817, %v831
        %v837 = vadd.f32 %v818, %v831
        %v838 = vadd.f32 %v819, %v831
        %v839 = vadd.f32 %v820, %v831
        %v840 = vadd.f32 %v821, %v831
        %v841 = vadd.f32 %v822, %v831
        %v842 = vadd.f32 %v823, %v831
        %v843 = vadd.f32 %v824, %v831
        %v844 = vadd.f32 %v825, %v831
        %v845 = vld [vmem:[#allocation8 + $0x1] sm:$0x1]
        %v846 = vlaneseq
        %v847 = vshrl.u32 %v846, 7
        %v848 = vsub.s32 0, %v847
        %v849 = vrot.slane %v845, %v848
        %v850 = vmul.f32 %v798, %v849
        %v851 = vmul.f32 %v799, %v849
        %v852 = vmul.f32 %v801, %v849
        %v853 = vmul.f32 %v802, %v849
        %v854 = vmul.f32 %v804, %v849
        %v855 = vmul.f32 %v805, %v849
        %v856 = vmul.f32 %v807, %v849
        %v857 = vmul.f32 %v808, %v849
        %vm866 = vcmask 1046528
        %v867 = vrot.slane %v850, 1
        %v868 = vrot.slane %v851, 1
        %v869 = vsel %vm866, %v867, %v868
        %v870 = vrot.slane %v852, 1
        %v871 = vrot.slane %v853, 1
        %v872 = vsel %vm866, %v870, %v871
        %v873 = vrot.slane %v854, 1
        %v874 = vrot.slane %v855, 1
        %v875 = vsel %vm866, %v873, %v874
        %v876 = vrot.slane %v856, 1
        %v877 = vrot.slane %v857, 1
        %v878 = vsel %vm866, %v876, %v877
        %v891 = vadd.f32 %v833, %v867
        %v892 = vadd.f32 %v834, %v869
        %v893 = vadd.f32 %v835, %v868
        %v894 = vadd.f32 %v836, %v870
        %v895 = vadd.f32 %v837, %v872
        %v896 = vadd.f32 %v838, %v871
        %v897 = vadd.f32 %v839, %v873
        %v898 = vadd.f32 %v840, %v875
        %v899 = vadd.f32 %v841, %v874
        %v900 = vadd.f32 %v842, %v876
        %v901 = vadd.f32 %v843, %v878
        %v902 = vadd.f32 %v844, %v877
        %v903 = vld [vmem:[#allocation2 + $0x10] sm:$0x1]
        %v904 = vld [vmem:[#allocation2 + $0x24] sm:$0x1]
        %v905 = vld [vmem:[#allocation2 + $0x38] sm:$0x1]
        %v906 = vld [vmem:[#allocation2 + $0x4c] sm:$0x1]
        %v907 = vunpack.c.l.bf16 %v903
        %v908 = vunpack.c.l.bf16 %v904
        %v909 = vunpack.c.l.bf16 %v905
        %v910 = vunpack.c.l.bf16 %v906
        %v911 = vld [vmem:[#allocation8 + $0x2] sm:$0x1]
        %v912 = vlaneseq
        %v913 = vshrl.u32 %v912, 7
        %v914 = vsub.s32 0, %v913
        %v915 = vrot.slane %v911, %v914
        %v916 = vmul.f32 %v798, %v915
        %v917 = vmul.f32 %v799, %v915
        %v918 = vmul.f32 %v907, %v915
        %v919 = vmul.f32 %v801, %v915
        %v920 = vmul.f32 %v802, %v915
        %v921 = vmul.f32 %v908, %v915
        %v922 = vmul.f32 %v804, %v915
        %v923 = vmul.f32 %v805, %v915
        %v924 = vmul.f32 %v909, %v915
        %v925 = vmul.f32 %v807, %v915
        %v926 = vmul.f32 %v808, %v915
        %v927 = vmul.f32 %v910, %v915
        %vm940 = vcmask 1045504
        %v941 = vrot.slane %v916, 2
        %v942 = vrot.slane %v917, 2
        %v943 = vsel %vm940, %v941, %v942
        %v944 = vrot.slane %v918, 2
        %v945 = vsel %vm940, %v942, %v944
        %v946 = vrot.slane %v919, 2
        %v947 = vrot.slane %v920, 2
        %v948 = vsel %vm940, %v946, %v947
        %v949 = vrot.slane %v921, 2
        %v950 = vsel %vm940, %v947, %v949
        %v951 = vrot.slane %v922, 2
        %v952 = vrot.slane %v923, 2
        %v953 = vsel %vm940, %v951, %v952
        %v954 = vrot.slane %v924, 2
        %v955 = vsel %vm940, %v952, %v954
        %v956 = vrot.slane %v925, 2
        %v957 = vrot.slane %v926, 2
        %v958 = vsel %vm940, %v956, %v957
        %v959 = vrot.slane %v927, 2
        %v960 = vsel %vm940, %v957, %v959
        %v973 = vadd.f32 %v891, %v941
        %v974 = vadd.f32 %v892, %v943
        %v975 = vadd.f32 %v893, %v945
        %v976 = vadd.f32 %v894, %v946
        %v977 = vadd.f32 %v895, %v948
        %v978 = vadd.f32 %v896, %v950
        %v979 = vadd.f32 %v897, %v951
        %v980 = vadd.f32 %v898, %v953
        %v981 = vadd.f32 %v899, %v955
        %v982 = vadd.f32 %v900, %v956
        %v983 = vadd.f32 %v901, %v958
        %v984 = vadd.f32 %v902, %v960
        %s985 = scalar_lea.vmem [#allocation2], 20
        %v986 = vld [vmem:[%s985 + $0x4] sm:$0x8]
        %v987 = vld [vmem:[%s985 + $0x8] sm:$0xf]
        %v988 = vld [vmem:[%s985 + $0xc] sm:$0xf]
        %v989 = vld [vmem:[%s985 + $0x18] sm:$0x8]
        %v990 = vld [vmem:[%s985 + $0x1c] sm:$0xf]
        %v991 = vld [vmem:[%s985 + $0x20] sm:$0xf]
        %v992 = vld [vmem:[%s985 + $0x2c] sm:$0x8]
        %v993 = vld [vmem:[%s985 + $0x30] sm:$0xf]
        %v994 = vld [vmem:[%s985 + $0x34] sm:$0xf]
        %v995 = vld [vmem:[%s985 + $0x40] sm:$0x8]
        %v996 = vld [vmem:[%s985 + $0x44] sm:$0xf]
        %v997 = vld [vmem:[%s985 + $0x48] sm:$0xf]
        %v998 = vunpack.c.l.bf16 %v986
        %v999 = vunpack.c.l.bf16 %v987
        %v1000 = vunpack.c.l.bf16 %v988
        %v1001 = vunpack.c.l.bf16 %v989
        %v1002 = vunpack.c.l.bf16 %v990
        %v1003 = vunpack.c.l.bf16 %v991
        %v1004 = vunpack.c.l.bf16 %v992
        %v1005 = vunpack.c.l.bf16 %v993
        %v1006 = vunpack.c.l.bf16 %v994
        %v1007 = vunpack.c.l.bf16 %v995
        %v1008 = vunpack.c.l.bf16 %v996
        %v1009 = vunpack.c.l.bf16 %v997
        %v1010 = vld [vmem:[#allocation8 + $0x3] sm:$0x1]
        %v1011 = vlaneseq
        %v1012 = vshrl.u32 %v1011, 7
        %v1013 = vsub.s32 0, %v1012
        %v1014 = vrot.slane %v1010, %v1013
        %v1015 = vmul.f32 %v998, %v1014
        %v1016 = vmul.f32 %v999, %v1014
        %v1017 = vmul.f32 %v1000, %v1014
        %v1018 = vmul.f32 %v1001, %v1014
        %v1019 = vmul.f32 %v1002, %v1014
        %v1020 = vmul.f32 %v1003, %v1014
        %v1021 = vmul.f32 %v1004, %v1014
        %v1022 = vmul.f32 %v1005, %v1014
        %v1023 = vmul.f32 %v1006, %v1014
        %v1024 = vmul.f32 %v1007, %v1014
        %v1025 = vmul.f32 %v1008, %v1014
        %v1026 = vmul.f32 %v1009, %v1014
        %v1027 = vadd.f32 %v973, %v1015
        %v1028 = vadd.f32 %v974, %v1016
        %v1029 = vadd.f32 %v975, %v1017
        %v1030 = vadd.f32 %v976, %v1018
        %v1031 = vadd.f32 %v977, %v1019
        %v1032 = vadd.f32 %v978, %v1020
        %v1033 = vadd.f32 %v979, %v1021
        %v1034 = vadd.f32 %v980, %v1022
        %v1035 = vadd.f32 %v981, %v1023
        %v1036 = vadd.f32 %v982, %v1024
        %v1037 = vadd.f32 %v983, %v1025
        %v1038 = vadd.f32 %v984, %v1026
        %v1039 = vld [vmem:[#allocation8 + $0x4] sm:$0x1]
        %v1040 = vlaneseq
        %v1041 = vshrl.u32 %v1040, 7
        %v1042 = vsub.s32 0, %v1041
        %v1043 = vrot.slane %v1039, %v1042
        %v1044 = vmul.f32 %v999, %v1043
        %v1045 = vmul.f32 %v1000, %v1043
        %v1046 = vmul.f32 %v1002, %v1043
        %v1047 = vmul.f32 %v1003, %v1043
        %v1048 = vmul.f32 %v1005, %v1043
        %v1049 = vmul.f32 %v1006, %v1043
        %v1050 = vmul.f32 %v1008, %v1043
        %v1051 = vmul.f32 %v1009, %v1043
        %v1060 = vrot.slane %v1044, 1
        %v1061 = vrot.slane %v1045, 1
        %v1062 = vsel %vm866, %v1060, %v1061
        %v1063 = vrot.slane %v1046, 1
        %v1064 = vrot.slane %v1047, 1
        %v1065 = vsel %vm866, %v1063, %v1064
        %v1066 = vrot.slane %v1048, 1
        %v1067 = vrot.slane %v1049, 1
        %v1068 = vsel %vm866, %v1066, %v1067
        %v1069 = vrot.slane %v1050, 1
        %v1070 = vrot.slane %v1051, 1
        %v1071 = vsel %vm866, %v1069, %v1070
        %v1084 = vadd.f32 %v1027, %v1060
        %v1085 = vadd.f32 %v1028, %v1062
        %v1086 = vadd.f32 %v1029, %v1061
        %v1087 = vadd.f32 %v1030, %v1063
        %v1088 = vadd.f32 %v1031, %v1065
        %v1089 = vadd.f32 %v1032, %v1064
        %v1090 = vadd.f32 %v1033, %v1066
        %v1091 = vadd.f32 %v1034, %v1068
        %v1092 = vadd.f32 %v1035, %v1067
        %v1093 = vadd.f32 %v1036, %v1069
        %v1094 = vadd.f32 %v1037, %v1071
        %v1095 = vadd.f32 %v1038, %v1070
        %v1096 = vld [vmem:[%s985 + $0x10] sm:$0x1]
        %v1097 = vld [vmem:[%s985 + $0x24] sm:$0x1]
        %v1098 = vld [vmem:[%s985 + $0x38] sm:$0x1]
        %v1099 = vld [vmem:[%s985 + $0x4c] sm:$0x1]
        %v1100 = vunpack.c.l.bf16 %v1096
        %v1101 = vunpack.c.l.bf16 %v1097
        %v1102 = vunpack.c.l.bf16 %v1098
        %v1103 = vunpack.c.l.bf16 %v1099
        %v1104 = vld [vmem:[#allocation8 + $0x5] sm:$0x1]
        %v1105 = vlaneseq
        %v1106 = vshrl.u32 %v1105, 7
        %v1107 = vsub.s32 0, %v1106
        %v1108 = vrot.slane %v1104, %v1107
        %v1109 = vmul.f32 %v999, %v1108
        %v1110 = vmul.f32 %v1000, %v1108
        %v1111 = vmul.f32 %v1100, %v1108
        %v1112 = vmul.f32 %v1002, %v1108
        %v1113 = vmul.f32 %v1003, %v1108
        %v1114 = vmul.f32 %v1101, %v1108
        %v1115 = vmul.f32 %v1005, %v1108
        %v1116 = vmul.f32 %v1006, %v1108
        %v1117 = vmul.f32 %v1102, %v1108
        %v1118 = vmul.f32 %v1008, %v1108
        %v1119 = vmul.f32 %v1009, %v1108
        %v1120 = vmul.f32 %v1103, %v1108
        %v1133 = vrot.slane %v1109, 2
        %v1134 = vrot.slane %v1110, 2
        %v1135 = vsel %vm940, %v1133, %v1134
        %v1136 = vrot.slane %v1111, 2
        %v1137 = vsel %vm940, %v1134, %v1136
        %v1138 = vrot.slane %v1112, 2
        %v1139 = vrot.slane %v1113, 2
        %v1140 = vsel %vm940, %v1138, %v1139
        %v1141 = vrot.slane %v1114, 2
        %v1142 = vsel %vm940, %v1139, %v1141
        %v1143 = vrot.slane %v1115, 2
        %v1144 = vrot.slane %v1116, 2
        %v1145 = vsel %vm940, %v1143, %v1144
        %v1146 = vrot.slane %v1117, 2
        %v1147 = vsel %vm940, %v1144, %v1146
        %v1148 = vrot.slane %v1118, 2
        %v1149 = vrot.slane %v1119, 2
        %v1150 = vsel %vm940, %v1148, %v1149
        %v1151 = vrot.slane %v1120, 2
        %v1152 = vsel %vm940, %v1149, %v1151
        %v1165 = vadd.f32 %v1084, %v1133
        %v1166 = vadd.f32 %v1085, %v1135
        %v1167 = vadd.f32 %v1086, %v1137
        %v1168 = vadd.f32 %v1087, %v1138
        %v1169 = vadd.f32 %v1088, %v1140
        %v1170 = vadd.f32 %v1089, %v1142
        %v1171 = vadd.f32 %v1090, %v1143
        %v1172 = vadd.f32 %v1091, %v1145
        %v1173 = vadd.f32 %v1092, %v1147
        %v1174 = vadd.f32 %v1093, %v1148
        %v1175 = vadd.f32 %v1094, %v1150
        %v1176 = vadd.f32 %v1095, %v1152
        %s1177 = scalar_lea.vmem [#allocation2], 40
        %v1178 = vld [vmem:[%s1177 + $0x4] sm:$0x8]
        %v1179 = vld [vmem:[%s1177 + $0x8] sm:$0xf]
        %v1180 = vld [vmem:[%s1177 + $0xc] sm:$0xf]
        %v1181 = vld [vmem:[%s1177 + $0x18] sm:$0x8]
        %v1182 = vld [vmem:[%s1177 + $0x1c] sm:$0xf]
        %v1183 = vld [vmem:[%s1177 + $0x20] sm:$0xf]
        %v1184 = vld [vmem:[%s1177 + $0x2c] sm:$0x8]
        %v1185 = vld [vmem:[%s1177 + $0x30] sm:$0xf]
        %v1186 = vld [vmem:[%s1177 + $0x34] sm:$0xf]
        %v1187 = vld [vmem:[%s1177 + $0x40] sm:$0x8]
        %v1188 = vld [vmem:[%s1177 + $0x44] sm:$0xf]
        %v1189 = vld [vmem:[%s1177 + $0x48] sm:$0xf]
        %v1190 = vunpack.c.l.bf16 %v1178
        %v1191 = vunpack.c.l.bf16 %v1179
        %v1192 = vunpack.c.l.bf16 %v1180
        %v1193 = vunpack.c.l.bf16 %v1181
        %v1194 = vunpack.c.l.bf16 %v1182
        %v1195 = vunpack.c.l.bf16 %v1183
        %v1196 = vunpack.c.l.bf16 %v1184
        %v1197 = vunpack.c.l.bf16 %v1185
        %v1198 = vunpack.c.l.bf16 %v1186
        %v1199 = vunpack.c.l.bf16 %v1187
        %v1200 = vunpack.c.l.bf16 %v1188
        %v1201 = vunpack.c.l.bf16 %v1189
        %v1202 = vld [vmem:[#allocation8 + $0x6] sm:$0x1]
        %v1203 = vlaneseq
        %v1204 = vshrl.u32 %v1203, 7
        %v1205 = vsub.s32 0, %v1204
        %v1206 = vrot.slane %v1202, %v1205
        %v1207 = vmul.f32 %v1190, %v1206
        %v1208 = vmul.f32 %v1191, %v1206
        %v1209 = vmul.f32 %v1192, %v1206
        %v1210 = vmul.f32 %v1193, %v1206
        %v1211 = vmul.f32 %v1194, %v1206
        %v1212 = vmul.f32 %v1195, %v1206
        %v1213 = vmul.f32 %v1196, %v1206
        %v1214 = vmul.f32 %v1197, %v1206
        %v1215 = vmul.f32 %v1198, %v1206
        %v1216 = vmul.f32 %v1199, %v1206
        %v1217 = vmul.f32 %v1200, %v1206
        %v1218 = vmul.f32 %v1201, %v1206
        %v1219 = vadd.f32 %v1165, %v1207
        %v1220 = vadd.f32 %v1166, %v1208
        %v1221 = vadd.f32 %v1167, %v1209
        %v1222 = vadd.f32 %v1168, %v1210
        %v1223 = vadd.f32 %v1169, %v1211
        %v1224 = vadd.f32 %v1170, %v1212
        %v1225 = vadd.f32 %v1171, %v1213
        %v1226 = vadd.f32 %v1172, %v1214
        %v1227 = vadd.f32 %v1173, %v1215
        %v1228 = vadd.f32 %v1174, %v1216
        %v1229 = vadd.f32 %v1175, %v1217
        %v1230 = vadd.f32 %v1176, %v1218
        %v1231 = vld [vmem:[#allocation8 + $0x7] sm:$0x1]
        %v1232 = vlaneseq
        %v1233 = vshrl.u32 %v1232, 7
        %v1234 = vsub.s32 0, %v1233
        %v1235 = vrot.slane %v1231, %v1234
        %v1236 = vmul.f32 %v1191, %v1235
        %v1237 = vmul.f32 %v1192, %v1235
        %v1238 = vmul.f32 %v1194, %v1235
        %v1239 = vmul.f32 %v1195, %v1235
        %v1240 = vmul.f32 %v1197, %v1235
        %v1241 = vmul.f32 %v1198, %v1235
        %v1242 = vmul.f32 %v1200, %v1235
        %v1243 = vmul.f32 %v1201, %v1235
        %v1252 = vrot.slane %v1236, 1
        %v1253 = vrot.slane %v1237, 1
        %v1254 = vsel %vm866, %v1252, %v1253
        %v1255 = vrot.slane %v1238, 1
        %v1256 = vrot.slane %v1239, 1
        %v1257 = vsel %vm866, %v1255, %v1256
        %v1258 = vrot.slane %v1240, 1
        %v1259 = vrot.slane %v1241, 1
        %v1260 = vsel %vm866, %v1258, %v1259
        %v1261 = vrot.slane %v1242, 1
        %v1262 = vrot.slane %v1243, 1
        %v1263 = vsel %vm866, %v1261, %v1262
        %v1276 = vadd.f32 %v1219, %v1252
        %v1277 = vadd.f32 %v1220, %v1254
        %v1278 = vadd.f32 %v1221, %v1253
        %v1279 = vadd.f32 %v1222, %v1255
        %v1280 = vadd.f32 %v1223, %v1257
        %v1281 = vadd.f32 %v1224, %v1256
        %v1282 = vadd.f32 %v1225, %v1258
        %v1283 = vadd.f32 %v1226, %v1260
        %v1284 = vadd.f32 %v1227, %v1259
        %v1285 = vadd.f32 %v1228, %v1261
        %v1286 = vadd.f32 %v1229, %v1263
        %v1287 = vadd.f32 %v1230, %v1262
        %v1288 = vld [vmem:[%s1177 + $0x10] sm:$0x1]
        %v1289 = vld [vmem:[%s1177 + $0x24] sm:$0x1]
        %v1290 = vld [vmem:[%s1177 + $0x38] sm:$0x1]
        %v1291 = vld [vmem:[%s1177 + $0x4c] sm:$0x1]
        %v1292 = vunpack.c.l.bf16 %v1288
        %v1293 = vunpack.c.l.bf16 %v1289
        %v1294 = vunpack.c.l.bf16 %v1290
        %v1295 = vunpack.c.l.bf16 %v1291
        %v1296 = vld [vmem:[#allocation8 + $0x8] sm:$0x1]
        %v1297 = vlaneseq
        %v1298 = vshrl.u32 %v1297, 7
        %v1299 = vsub.s32 0, %v1298
        %v1300 = vrot.slane %v1296, %v1299
        %v1301 = vmul.f32 %v1191, %v1300
        %v1302 = vmul.f32 %v1192, %v1300
        %v1303 = vmul.f32 %v1292, %v1300
        %v1304 = vmul.f32 %v1194, %v1300
        %v1305 = vmul.f32 %v1195, %v1300
        %v1306 = vmul.f32 %v1293, %v1300
        %v1307 = vmul.f32 %v1197, %v1300
        %v1308 = vmul.f32 %v1198, %v1300
        %v1309 = vmul.f32 %v1294, %v1300
        %v1310 = vmul.f32 %v1200, %v1300
        %v1311 = vmul.f32 %v1201, %v1300
        %v1312 = vmul.f32 %v1295, %v1300
        %v1325 = vrot.slane %v1301, 2
        %v1326 = vrot.slane %v1302, 2
        %v1327 = vsel %vm940, %v1325, %v1326
        %v1328 = vrot.slane %v1303, 2
        %v1329 = vsel %vm940, %v1326, %v1328
        %v1330 = vrot.slane %v1304, 2
        %v1331 = vrot.slane %v1305, 2
        %v1332 = vsel %vm940, %v1330, %v1331
        %v1333 = vrot.slane %v1306, 2
        %v1334 = vsel %vm940, %v1331, %v1333
        %v1335 = vrot.slane %v1307, 2
        %v1336 = vrot.slane %v1308, 2
        %v1337 = vsel %vm940, %v1335, %v1336
        %v1338 = vrot.slane %v1309, 2
        %v1339 = vsel %vm940, %v1336, %v1338
        %v1340 = vrot.slane %v1310, 2
        %v1341 = vrot.slane %v1311, 2
        %v1342 = vsel %vm940, %v1340, %v1341
        %v1343 = vrot.slane %v1312, 2
        %v1344 = vsel %vm940, %v1341, %v1343
        %v1357 = vadd.f32 %v1276, %v1325
        %v1358 = vadd.f32 %v1277, %v1327
        %v1359 = vadd.f32 %v1278, %v1329
        %v1360 = vadd.f32 %v1279, %v1330
        %v1361 = vadd.f32 %v1280, %v1332
        %v1362 = vadd.f32 %v1281, %v1334
        %v1363 = vadd.f32 %v1282, %v1335
        %v1364 = vadd.f32 %v1283, %v1337
        %v1365 = vadd.f32 %v1284, %v1339
        %v1366 = vadd.f32 %v1285, %v1340
        %v1367 = vadd.f32 %v1286, %v1342
        %v1368 = vadd.f32 %v1287, %v1344
        %vm1381 = vcmask 1040384
        %v1382 = vrot.slane %v1357, 7
        %v1383 = vrot.slane %v1358, 7
        %v1384 = vsel %vm1381, %v1382, %v1383
        %v1385 = vrot.slane %v1359, 7
        %v1386 = vsel %vm1381, %v1383, %v1385
        %v1387 = vrot.slane %v1360, 7
        %v1388 = vrot.slane %v1361, 7
        %v1389 = vsel %vm1381, %v1387, %v1388
        %v1390 = vrot.slane %v1362, 7
        %v1391 = vsel %vm1381, %v1388, %v1390
        %v1392 = vrot.slane %v1363, 7
        %v1393 = vrot.slane %v1364, 7
        %v1394 = vsel %vm1381, %v1392, %v1393
        %v1395 = vrot.slane %v1365, 7
        %v1396 = vsel %vm1381, %v1393, %v1395
        %v1397 = vrot.slane %v1366, 7
        %v1398 = vrot.slane %v1367, 7
        %v1399 = vsel %vm1381, %v1397, %v1398
        %v1400 = vrot.slane %v1368, 7
        %v1401 = vsel %vm1381, %v1398, %v1400
        %v1410 = vpack.c.bf16 %v1386, %v1384
        %v1411 = vpack.c.bf16 %v1391, %v1389
        %v1412 = vpack.c.bf16 %v1396, %v1394
        %v1413 = vpack.c.bf16 %v1401, %v1399
        %v1414 = vld [vmem:[#allocation9] sm:$0xf]
        %v1415 = vld [vmem:[#allocation9 + $0x4] sm:$0xf]
        %v1416 = vld [vmem:[#allocation9 + $0x8] sm:$0xf]
        %v1417 = vld [vmem:[#allocation9 + $0xc] sm:$0xf]
        %v1418 = vld [vmem:[#allocation9 + $0x10] sm:$0xf]
        %v1419 = vld [vmem:[#allocation9 + $0x14] sm:$0xf]
        %v1420 = vld [vmem:[#allocation9 + $0x18] sm:$0xf]
        %v1421 = vld [vmem:[#allocation9 + $0x1c] sm:$0xf]
        %v1422 = vld [vmem:[#allocation9 + $0x20] sm:$0xf]
        %v1423 = vld [vmem:[#allocation9 + $0x24] sm:$0xf]
        %v1424 = vld [vmem:[#allocation9 + $0x28] sm:$0xf]
        %v1425 = vld [vmem:[#allocation9 + $0x2c] sm:$0xf]
        %v1426 = vld [vmem:[#allocation9 + $0x30] sm:$0xf]
        %v1427 = vld [vmem:[#allocation9 + $0x34] sm:$0xf]
        %v1428 = vld [vmem:[#allocation9 + $0x38] sm:$0xf]
        %v1429 = vld [vmem:[#allocation9 + $0x3c] sm:$0xf]
        %v1430 = vld [vmem:[%s6] sm:$0x1]
        %v1432 = vlaneseq
        %v1433 = vshrl.u32 %v1432, 7
        %v1434 = vsub.s32 0, %v1433
        %v1435 = vrot.slane %v1430, %v1434
        %v1453 = vunpack.c.l.b16 %v1414
        %v1454 = vunpack.c.l.b16 %v1415
        %v1455 = vunpack.c.l.b16 %v1416
        %v1456 = vunpack.c.l.b16 %v1417
        %v1457 = vunpack.c.l.b16 %v1418
        %v1458 = vunpack.c.l.b16 %v1419
        %v1459 = vunpack.c.l.b16 %v1420
        %v1460 = vunpack.c.l.b16 %v1421
        %v1461 = vunpack.c.l.b16 %v1422
        %v1462 = vunpack.c.l.b16 %v1423
        %v1463 = vunpack.c.l.b16 %v1424
        %v1464 = vunpack.c.l.b16 %v1425
        %v1465 = vunpack.c.l.b16 %v1426
        %v1466 = vunpack.c.l.b16 %v1427
        %v1467 = vunpack.c.l.b16 %v1428
        %v1468 = vunpack.c.l.b16 %v1429
        %v1469 = vpack.c.b16 %v1454, %v1453
        %v1470 = vpack.c.b16 %v1456, %v1455
        %v1471 = vpack.c.b16 %v1458, %v1457
        %v1472 = vpack.c.b16 %v1460, %v1459
        %v1473 = vpack.c.b16 %v1462, %v1461
        %v1474 = vpack.c.b16 %v1464, %v1463
        %v1475 = vpack.c.b16 %v1466, %v1465
        %v1476 = vpack.c.b16 %v1468, %v1467
        %1485 = vmatprep.subr.bf16.mxu0 0
        %1486 = vmatpush1.bf16.msra.mxu0 %v1476
        %1487 = vmatprep.subr.bf16.mxu0 0
        %1488 = vmatpush1.bf16.msra.mxu0 %v1475
        %1489 = vmatprep.subr.bf16.mxu0 0
        %1490 = vmatpush1.bf16.msra.mxu0 %v1474
        %1491 = vmatprep.subr.bf16.mxu0 0
        %1492 = vmatpush1.bf16.msra.mxu0 %v1473
        %1493 = vmatprep.subr.bf16.mxu0 0
        %1494 = vmatpush1.bf16.msra.mxu0 %v1472
        %1495 = vmatprep.subr.bf16.mxu0 0
        %1496 = vmatpush1.bf16.msra.mxu0 %v1471
        %1497 = vmatprep.subr.bf16.mxu0 0
        %1498 = vmatpush1.bf16.msra.mxu0 %v1470
        %1499 = vmatprep.subr.bf16.mxu0 0
        %1500 = vmatpush1.bf16.msra.mxu0 %v1469
        %1501 = vmatprep.subr.bf16.mxu0 0
        %1502 = vmatpush2.bf16.msra.mxu0 0
        %1503 = vmatprep.subr.bf16.mxu0 0
        %1504 = vmatpush2.bf16.msra.mxu0 0
        %1505 = vmatprep.subr.bf16.mxu0 0
        %1506 = vmatpush2.bf16.msra.mxu0 0
        %1507 = vmatprep.subr.bf16.mxu0 0
        %1508 = vmatpush2.bf16.msra.mxu0 0
        %1509 = vmatprep.subr.bf16.mxu0 0
        %1510 = vmatpush2.bf16.msra.mxu0 0
        %1511 = vmatprep.subr.bf16.mxu0 0
        %1512 = vmatpush2.bf16.msra.mxu0 0
        %1513 = vmatprep.subr.bf16.mxu0 0
        %1514 = vmatpush2.bf16.msra.mxu0 0
        %1515 = vmatprep.subr.bf16.mxu0 0
        %1516 = vmatpush2.bf16.msra.mxu0 0
        %1517 = vmatprep.mubr.bf16.mxu0 0
        %1518 = vmatmul.mubr.bf16.gmra.mxu0 %v1410
        %v1519 = vpop.f32.mrf.mxu0
        %v1520 = vadd.f32 %v1435, %v1519
        %v1521 = vpop.f32.mrf.mxu0
        %v1522 = vpop.f32.mrf.mxu0
        %v1523 = vadd.f32 %v1435, %v1522
        %v1524 = vpop.f32.mrf.mxu0
        %1525 = vmatprep.mubr.bf16.mxu0 0
        %1526 = vmatmul.mubr.bf16.gmra.mxu0 %v1411
        %v1527 = vpop.f32.mrf.mxu0
        %v1528 = vadd.f32 %v1435, %v1527
        %v1529 = vpop.f32.mrf.mxu0
        %v1530 = vpop.f32.mrf.mxu0
        %v1531 = vadd.f32 %v1435, %v1530
        %v1532 = vpop.f32.mrf.mxu0
        %1533 = vmatprep.mubr.bf16.mxu0 0
        %1534 = vmatmul.mubr.bf16.gmra.mxu0 %v1412
        %v1535 = vpop.f32.mrf.mxu0
        %v1536 = vadd.f32 %v1435, %v1535
        %v1537 = vpop.f32.mrf.mxu0
        %v1538 = vpop.f32.mrf.mxu0
        %v1539 = vadd.f32 %v1435, %v1538
        %v1540 = vpop.f32.mrf.mxu0
        %1541 = vmatprep.mubr.bf16.mxu0 0
        %1542 = vmatmul.mubr.bf16.gmra.mxu0 %v1413
        %v1543 = vpop.f32.mrf.mxu0
        %v1544 = vadd.f32 %v1435, %v1543
        %v1545 = vpop.f32.mrf.mxu0
        %v1546 = vpop.f32.mrf.mxu0
        %v1547 = vadd.f32 %v1435, %v1546
        %v1548 = vpop.f32.mrf.mxu0
        %1549 = vdwg.mxu0
        %v1550 = vadd.f32 %v1520, 3.0
        %v1551 = vadd.f32 %v1523, 3.0
        %v1552 = vadd.f32 %v1528, 3.0
        %v1553 = vadd.f32 %v1531, 3.0
        %v1554 = vadd.f32 %v1536, 3.0
        %v1555 = vadd.f32 %v1539, 3.0
        %v1556 = vadd.f32 %v1544, 3.0
        %v1557 = vadd.f32 %v1547, 3.0
        %v1558 = vmax.f32 %v1550, 0.0
        %v1559 = vmax.f32 %v1551, 0.0
        %v1560 = vmax.f32 %v1552, 0.0
        %v1561 = vmax.f32 %v1553, 0.0
        %v1562 = vmax.f32 %v1554, 0.0
        %v1563 = vmax.f32 %v1555, 0.0
        %v1564 = vmax.f32 %v1556, 0.0
        %v1565 = vmax.f32 %v1557, 0.0
        %v1566 = vmin.f32 %v1558, 6.0
        %v1567 = vmin.f32 %v1559, 6.0
        %v1568 = vmin.f32 %v1560, 6.0
        %v1569 = vmin.f32 %v1561, 6.0
        %v1570 = vmin.f32 %v1562, 6.0
        %v1571 = vmin.f32 %v1563, 6.0
        %v1572 = vmin.f32 %v1564, 6.0
        %v1573 = vmin.f32 %v1565, 6.0
        %v1574 = vmul.f32 %v1520, %v1566
        %v1575 = vmul.f32 %v1523, %v1567
        %v1576 = vmul.f32 %v1528, %v1568
        %v1577 = vmul.f32 %v1531, %v1569
        %v1578 = vmul.f32 %v1536, %v1570
        %v1579 = vmul.f32 %v1539, %v1571
        %v1580 = vmul.f32 %v1544, %v1572
        %v1581 = vmul.f32 %v1547, %v1573
        %v1582 = vmul.f32 %v1574, 0.16666667
        %v1583 = vmul.f32 %v1575, 0.16666667
        %v1584 = vmul.f32 %v1576, 0.16666667
        %v1585 = vmul.f32 %v1577, 0.16666667
        %v1586 = vmul.f32 %v1578, 0.16666667
        %v1587 = vmul.f32 %v1579, 0.16666667
        %v1588 = vmul.f32 %v1580, 0.16666667
        %v1589 = vmul.f32 %v1581, 0.16666667
        %v1590 = vadd.f32 %v1582, %v1583
        %v1591 = vadd.f32 %v1590, %v1584
        %v1592 = vadd.f32 %v1591, %v1585
        %v1593 = vadd.f32 %v1592, %v1586
        %v1594 = vadd.f32 %v1593, %v1587
        %v1595 = vadd.f32 %v1594, %v1588
        %v1596 = vadd.f32 %v1595, %v1589
        %v1597 = vrot.slane %v1596, 4
        %v1598 = vadd.f32 %v1596, %v1597
        %v1599 = vrot.slane %v1598, 2
        %v1600 = vadd.f32 %v1598, %v1599
        %v1601 = vrot.slane %v1600, 1
        %v1602 = vadd.f32 %v1600, %v1601
        %v1603 = vmul.f32 %v1602, 0.00390625
        %1604 = vst [vmem:[%s393] sm:$0x1] %v1603
        %v1605 = vpack.c.bf16 %v1583, %v1582
        %v1606 = vpack.c.bf16 %v1585, %v1584
        %v1607 = vpack.c.bf16 %v1587, %v1586
        %v1608 = vpack.c.bf16 %v1589, %v1588
        %v1613 = vunpack.c.l.b16 %v1605
        %v1614 = vunpack.c.h.b16 %v1605
        %v1615 = vunpack.c.l.b16 %v1606
        %v1616 = vunpack.c.h.b16 %v1606
        %v1617 = vunpack.c.l.b16 %v1607
        %v1618 = vunpack.c.h.b16 %v1607
        %v1619 = vunpack.c.l.b16 %v1608
        %v1620 = vunpack.c.h.b16 %v1608
        %v1621 = vpack.c.b16 %v1613, %v1613
        %v1622 = vpack.c.b16 %v1614, %v1614
        %v1623 = vpack.c.b16 %v1615, %v1615
        %v1624 = vpack.c.b16 %v1616, %v1616
        %v1625 = vpack.c.b16 %v1617, %v1617
        %v1626 = vpack.c.b16 %v1618, %v1618
        %v1627 = vpack.c.b16 %v1619, %v1619
        %v1628 = vpack.c.b16 %v1620, %v1620
        %1637 = vst [vmem:[%s387] sm:$0xf] %v1621
        %1638 = vst [vmem:[%s387 + $0x4] sm:$0xf] %v1622
        %1639 = vst [vmem:[%s387 + $0x8] sm:$0xf] %v1623
        %1640 = vst [vmem:[%s387 + $0xc] sm:$0xf] %v1624
        %1641 = vst [vmem:[%s387 + $0x10] sm:$0xf] %v1625
        %1642 = vst [vmem:[%s387 + $0x14] sm:$0xf] %v1626
        %1643 = vst [vmem:[%s387 + $0x18] sm:$0xf] %v1627
        %1644 = vst [vmem:[%s387 + $0x1c] sm:$0xf] %v1628
        %s1645 = sand.u32 %s205, 1
        %s1646 = scalar_lea.sflag [#allocation5], %s1645
        %s1647 = sand.u32 %s205, 1
        %s1648 = smul.addr %s1647, 32
        %s1649 = scalar_lea.vmem [#allocation11], %s1648
        %s1650 = sand.u32 %s233, 1
        %s1651 = scalar_lea.sflag [#allocation13], %s1650
        %s1652 = sand.u32 %s233, 1
        %s1653 = scalar_lea.vmem [#allocation12], %s1652
        // Predicated region
        $region73: #{tpu_custom_call.1} parent=47 // pred_check
          %p1654 = pneg %p215
        $region74: #{tpu_custom_call.1} parent=47 // pred_check_branch
          %1656 = sbr.rel (%p1654) target = $region76
        $region75: #{tpu_custom_call.1} parent=47 // pred_region
          %s1657 = smul.u32 4, %s36
          %s1659 = ssub.s32 512, 512
          %1660 = vsyncadd %s1646, %s1659
          %s1661 = smul.addr %s1657, 2
          %s1662 = smul.addr %s35, 32
          %s1663 = sadd.s32 %s1661, %s1662
          %s1664 = smul.addr %s1663, 64
          %s1665 = scalar_lea.hbm %s7, %s1664
          %s1666 = sshll.u32 %s1649, 4
          %s1667 = int_to_ptr.vmem [resolvable:$true] %s1666
          %1672 = dma.vmem_to_hbm [thread:$0]  %s1667, 512, %s1665, %s1646, 64, 64, 4
        $region76: #{tpu_custom_call.1} parent=47 // pred_fallthru
          _
        // Predicated region
        $region77: #{tpu_custom_call.1} parent=47 // pred_check
          %p1673 = pneg %p243
        $region78: #{tpu_custom_call.1} parent=47 // pred_check_branch
          %1675 = sbr.rel (%p1673) target = $region80
        $region79: #{tpu_custom_call.1} parent=47 // pred_region
          %s1677 = ssub.s32 16, 16
          %1678 = vsyncadd %s1651, %s1677
          %s1679 = smul.addr %s35, 4
          %s1680 = sadd.s32 %s36, %s1679
          %s1681 = smul.addr %s1680, 16
          %s1682 = scalar_lea.hbm %s8, %s1681
          %s1684 = sshll.u32 %s1653, 4
          %s1685 = int_to_ptr.vmem [resolvable:$true] %s1684
          %1687 = dma.vmem_to_hbm [thread:$0]  %s1685, 16, %s1682, %s1651
        $region80: #{tpu_custom_call.1} parent=47 // pred_fallthru
          _
      $region48: #{tpu_custom_call.1} parent=5 // pred_fallthru
        _
      %p1688 = scmp.le.s32.totalorder 2, %s26
      // Predicated region
      $region81: #{tpu_custom_call.1} parent=5 // pred_check
        %p1689 = pneg %p1688
      $region82: #{tpu_custom_call.1} parent=5 // pred_check_branch
        %1691 = sbr.rel (%p1689) target = $region84
      $region83: #{tpu_custom_call.1} parent=5 // pred_region
        %s1692 = ssub.s32 %s26, 2
        // Predicated region
        $region85: #{tpu_custom_call.1} parent=83 // pred_check
          %p1693 = pneg %p221
        $region86: #{tpu_custom_call.1} parent=83 // pred_check_branch
          %1695 = sbr.rel (%p1693) target = $region88
        $region87: #{tpu_custom_call.1} parent=83 // pred_region
          %s1696 = sand.u32 %s206, 1
          %s1697 = scalar_lea.sflag [#allocation5], %s1696
          %s1698 = sand.u32 %s206, 1
          %s1699 = smul.addr %s1698, 32
          %s1700 = scalar_lea.vmem [#allocation11], %s1699
          %1701 = dma.done %s1697, 512
        $region88: #{tpu_custom_call.1} parent=83 // pred_fallthru
          _
        // Predicated region
        $region89: #{tpu_custom_call.1} parent=83 // pred_check
          %p1702 = pneg %p249
        $region90: #{tpu_custom_call.1} parent=83 // pred_check_branch
          %1704 = sbr.rel (%p1702) target = $region92
        $region91: #{tpu_custom_call.1} parent=83 // pred_region
          %s1705 = sand.u32 %s234, 1
          %s1706 = scalar_lea.sflag [#allocation13], %s1705
          %s1707 = sand.u32 %s234, 1
          %s1708 = scalar_lea.vmem [#allocation12], %s1707
          %1709 = dma.done %s1706, 16
        $region92: #{tpu_custom_call.1} parent=83 // pred_fallthru
          _
      $region84: #{tpu_custom_call.1} parent=5 // pred_fallthru
        _
    $region6: #{tpu_custom_call.1} parent=1 // loop_footer
      %s30 = sadd.s32 1, %s26
    $region7: #{tpu_custom_call.1} parent=1 // loop_footer_branch
      %25 = sbr.rel target = $region3
    $region8: #{tpu_custom_call.1} parent=1 // loop_exit
      _
    %1710 = vsyncpa [#allocation4], 1
    %s1711 = scalar_lea.sflag [#allocation4], 1
    %1712 = vsyncpa %s1711, 1
    %1713 = vsyncpa [#allocation7], 1
    %1714 = vsyncpa [#allocation10], 1
    %1715 = vsyncpa [#allocation5], 1
    %s1716 = scalar_lea.sflag [#allocation5], 1
    %1717 = vsyncpa %s1716, 1
    %1718 = vsyncpa [#allocation13], 1
    %s1719 = scalar_lea.sflag [#allocation13], 1
    %1720 = vsyncpa %s1719, 1

</llo_original>
